<compile_context>
chip_gen: v7x
topology: tpu7x:2x2x1
jax: 0.10.0
libtpu: 0.0.40
codegen_flags: <defaults>
</compile_context>

<pallas_src>
import functools
import math

import jax
import jax.numpy as jnp
from jax import lax
from jax.experimental import pallas as pl
from jax.experimental.pallas import tpu as pltpu


# ------------------------------ fused kernel ---------------------------------
def _fused_attn_kernel(x_ref, w_big_ref, wo_ref, cos_ref, sin_ref,
                       segq_ref, segk_ref, o_ref, attn_ref, *,
                       num_q_heads, num_kv_heads, head_dim):
    T = x_ref.shape[0]
    D = head_dim
    G = num_q_heads // num_kv_heads
    qk_w = (num_q_heads + num_kv_heads) * D      # q|k columns
    qkv_w = qk_w + num_kv_heads * D              # q|k|v columns
    k_off = num_q_heads * D

    # ---- fused [QKV | rotate-half(QK)] projection: one bf16 MXU matmul ------
    proj = jnp.dot(x_ref[...], w_big_ref[...],
                   preferred_element_type=jnp.float32)        # (T, qkv_w+qk_w) f32

    qk = proj[:, :qk_w]                                        # (T, (Hq+Hk)*D) f32
    v = proj[:, qk_w:qkv_w]                                    # (T, Hk*D)      f32
    rot = proj[:, qkv_w:]                                      # (T, (Hq+Hk)*D) f32

    # ---- RoPE combine on q|k columns only (1/sqrt(D) folded into q cols) ----
    qk_r = qk * cos_ref[...] + rot * sin_ref[...]              # f32, no bf16 detour

    # ---- varlen causal mask built in-kernel from O(T) segment ids -----------
    row = lax.broadcasted_iota(jnp.int32, (T, T), 0)
    col = lax.broadcasted_iota(jnp.int32, (T, T), 1)
    seg_q = jnp.broadcast_to(segq_ref[...], (T, T))
    seg_k = jnp.broadcast_to(segk_ref[...], (T, T))
    allowed = (seg_q == seg_k) & (row >= col)
    allowed_g = jnp.tile(allowed, (G, 1))                      # (G*T, T)
    neg = jnp.float32(-1e30)                                   # scores stay f32

    dn = (((1,), (1,)), ((), ()))                              # contract head_dim

    for g in range(num_kv_heads):                              # static, unrolled
        # stack the group's G q-heads along the sublane axis -> (G*T, D)
        q_grp = jnp.concatenate(
            [qk_r[:, (g * G + j) * D:(g * G + j + 1) * D] for j in range(G)],
            axis=0).astype(jnp.bfloat16)
        k_g = qk_r[:, k_off + g * D:k_off + (g + 1) * D].astype(jnp.bfloat16)
        v_g = v[:, g * D:(g + 1) * D].astype(jnp.bfloat16)

        s = lax.dot_general(q_grp, k_g, dn,
                            preferred_element_type=jnp.float32)   # (G*T, T) f32
        s = jnp.where(allowed_g, s, neg)
        m = jnp.max(s, axis=-1, keepdims=True)
        p = jnp.exp(s - m)                                         # f32 (v5e-safe)
        l = jnp.sum(p, axis=-1, keepdims=True)
        o = jnp.dot(p.astype(jnp.bfloat16), v_g,
                    preferred_element_type=jnp.float32)            # (G*T, D) f32
        o = o * pl.reciprocal(l, approx=True)

        # retire each head's (T, D) result straight into the VMEM scratch slab
        for j in range(G):
            h = g * G + j
            attn_ref[:, h * D:(h + 1) * D] = (
                o[j * T:(j + 1) * T, :].astype(jnp.bfloat16))

    # lane-dense (T, Hq*D) slab -> single MXU output projection
    o_ref[...] = jnp.dot(attn_ref[...], wo_ref[...],
                         preferred_element_type=jnp.float32).astype(o_ref.dtype)


# --------------------------------- forward -----------------------------------
def self_attention_forward(x, cu_seqlens, w_q, w_k, w_v, w_o,
                           num_q_heads, num_kv_heads, head_dim, rope_base):
    T, hidden = x.shape
    D = head_dim
    half = D // 2
    dtype = x.dtype
    scale = 1.0 / math.sqrt(D)

    # fused, pre-transposed projection weights with rotate-half folded in:
    #   w_big = [ Wq^T | Wk^T | Wv^T | rot(Wq^T) | rot(Wk^T) ]   (hidden, 448)
    wqk_t = jnp.concatenate([w_q.T, w_k.T], axis=1)            # (hidden, (Hq+Hk)*D)
    wv_t = w_v.T                                               # (hidden, Hk*D)

    def rotate_half_cols(w):  # exact: pure sign/column permutation of bf16 weights
        H = w.shape[1] // D
        w3 = w.reshape(w.shape[0], H, D)
        return jnp.concatenate([-w3[..., half:], w3[..., :half]],
                               axis=-1).reshape(w.shape[0], H * D)

    w_big = jnp.concatenate([wqk_t, wv_t, rotate_half_cols(wqk_t)],
                            axis=1).astype(jnp.bfloat16)       # (hidden, 448)
    wo_t = w_o.T                                               # (Hq*D, hidden)

    # O(T) glue: per-token segment ids & in-segment positions (reset at starts).
    # NOTE: relies on cu_seqlens[0] == 0 and cu_seqlens[-1] == T (asserted by
    # the caller) so every row keeps its causal diagonal in-segment.
    idx = jnp.arange(T, dtype=jnp.int32)
    seg_ids = jnp.sum(idx[:, None] >= cu_seqlens[None, 1:-1], axis=1).astype(jnp.int32)
    pos = (idx - cu_seqlens[:-1][seg_ids]).astype(jnp.float32)

    # RoPE tables for the q|k columns only; 1/sqrt(D) folded into the q columns.
    inv_freq = 1.0 / (rope_base ** (jnp.arange(half, dtype=jnp.float32) / half))
    ang = pos[:, None] * inv_freq[None, :]                     # (T, half)
    cos1 = jnp.concatenate([jnp.cos(ang), jnp.cos(ang)], axis=-1)   # (T, D)
    sin1 = jnp.concatenate([jnp.sin(ang), jnp.sin(ang)], axis=-1)   # (T, D)
    cos_t = jnp.concatenate([jnp.tile(cos1, (1, num_q_heads)) * scale,
                             jnp.tile(cos1, (1, num_kv_heads))], axis=1)
    sin_t = jnp.concatenate([jnp.tile(sin1, (1, num_q_heads)) * scale,
                             jnp.tile(sin1, (1, num_kv_heads))], axis=1)

    seg_q = seg_ids[:, None]          # (T, 1) int32
    seg_k = seg_ids[None, :]          # (1, T) int32

    kernel = functools.partial(_fused_attn_kernel,
                               num_q_heads=num_q_heads,
                               num_kv_heads=num_kv_heads,
                               head_dim=D)

    # Single fused pallas_call; grid=() -> every operand is a whole-array VMEM
    # block (~0.3 MiB total, fits on v5e/v6e/v7x with large margin).
    return pl.pallas_call(
        kernel,
        out_shape=jax.ShapeDtypeStruct((T, hidden), dtype),
        scratch_shapes=[pltpu.VMEM((T, num_q_heads * D), jnp.bfloat16)],
    )(x, w_big, wo_t, cos_t, sin_t, seg_q, seg_k)


# ----------------------------------- main -------------------------------------
if __name__ == "__main__":
    hidden_size = 64
    num_q_heads = 4
    num_kv_heads = 2
    head_dim = 32
    rope_base = 10000.0
    T = 128
    cu_seqlens = jnp.array([0, 60, 128], dtype=jnp.int32)

    # varlen contract required by the kernel's masking scheme
    assert int(cu_seqlens[0]) == 0 and int(cu_seqlens[-1]) == T

    key = jax.random.PRNGKey(0)
    k_x, k_q, k_k, k_v, k_o = jax.random.split(key, 5)

    def xavier_uniform(k, out_dim, in_dim):
        bound = math.sqrt(6.0 / (in_dim + out_dim))
        w = jax.random.uniform(k, (out_dim, in_dim), jnp.float32, -bound, bound)
        return w.astype(jnp.bfloat16)

    w_q = xavier_uniform(k_q, num_q_heads * head_dim, hidden_size)
    w_k = xavier_uniform(k_k, num_kv_heads * head_dim, hidden_size)
    w_v = xavier_uniform(k_v, num_kv_heads * head_dim, hidden_size)
    w_o = xavier_uniform(k_o, hidden_size, num_q_heads * head_dim)

    x = jax.random.normal(k_x, (T, hidden_size), jnp.float32).astype(jnp.bfloat16)

    fwd = jax.jit(self_attention_forward, static_argnums=(6, 7, 8, 9))
    out = fwd(x, cu_seqlens, w_q, w_k, w_v, w_o,
              num_q_heads, num_kv_heads, head_dim, rope_base)
    out = jax.block_until_ready(out)
    assert out.shape == (T, hidden_size)
    assert out.dtype == jnp.bfloat16
    assert bool(jnp.all(jnp.isfinite(out.astype(jnp.float32))))
    print("KERNEL_OK")
</pallas_src>

<mosaic_0001>
module attributes {stable_mosaic.version = 11 : i64} {
  func.func @_fused_attn_kernel(%arg0: memref<128x64xbf16, #tpu.memory_space<vmem>>, %arg1: memref<64x448xbf16, #tpu.memory_space<vmem>>, %arg2: memref<128x64xbf16, #tpu.memory_space<vmem>>, %arg3: memref<128x192xf32, #tpu.memory_space<vmem>>, %arg4: memref<128x192xf32, #tpu.memory_space<vmem>>, %arg5: memref<128x1xi32, #tpu.memory_space<vmem>>, %arg6: memref<1x128xi32, #tpu.memory_space<vmem>>, %arg7: memref<128x64xbf16, #tpu.memory_space<vmem>>, %arg8: memref<128x128xbf16, #tpu.memory_space<vmem>>) attributes {dimension_semantics = [], scalar_prefetch = 0 : i64, scratch_operands = 1 : i64, tpu.core_type = #tpu.core_type<tc>} {
    %c0 = arith.constant 0 : index
    %c0_0 = arith.constant 0 : index
    %0 = vector.load %arg0[%c0, %c0_0] : memref<128x64xbf16, #tpu.memory_space<vmem>>, vector<128x64xbf16>
    %c0_1 = arith.constant 0 : index
    %c0_2 = arith.constant 0 : index
    %1 = vector.load %arg1[%c0_1, %c0_2] : memref<64x448xbf16, #tpu.memory_space<vmem>>, vector<64x448xbf16>
    %cst = arith.constant dense<0.000000e+00> : vector<128x448xf32>
    %2 = tpu.matmul %0, %1, %cst {dimension_numbers = #tpu.dot_dimension_numbers<[1], [0], [0], [1], [0, 0, 1, 1], [], []>} : vector<128x64xbf16>, vector<64x448xbf16>, vector<128x448xf32> -> vector<128x448xf32>
    %3 = vector.extract_strided_slice %2 {offsets = [0, 0], sizes = [128, 192], strides = [1, 1]} : vector<128x448xf32> to vector<128x192xf32>
    %4 = vector.extract_strided_slice %2 {offsets = [0, 192], sizes = [128, 64], strides = [1, 1]} : vector<128x448xf32> to vector<128x64xf32>
    %5 = vector.extract_strided_slice %2 {offsets = [0, 256], sizes = [128, 192], strides = [1, 1]} : vector<128x448xf32> to vector<128x192xf32>
    %c0_3 = arith.constant 0 : index
    %c0_4 = arith.constant 0 : index
    %6 = vector.load %arg3[%c0_3, %c0_4] : memref<128x192xf32, #tpu.memory_space<vmem>>, vector<128x192xf32>
    %7 = arith.mulf %3, %6 : vector<128x192xf32>
    %c0_5 = arith.constant 0 : index
    %c0_6 = arith.constant 0 : index
    %8 = vector.load %arg4[%c0_5, %c0_6] : memref<128x192xf32, #tpu.memory_space<vmem>>, vector<128x192xf32>
    %9 = arith.mulf %5, %8 : vector<128x192xf32>
    %10 = arith.addf %7, %9 : vector<128x192xf32>
    %11 = tpu.iota {dimensions = array<i32: 0>} : vector<128x128xi32>
    %12 = tpu.iota {dimensions = array<i32: 1>} : vector<128x128xi32>
    %c0_7 = arith.constant 0 : index
    %c0_8 = arith.constant 0 : index
    %13 = vector.load %arg5[%c0_7, %c0_8] : memref<128x1xi32, #tpu.memory_space<vmem>>, vector<128x1xi32>
    %14 = vector.shape_cast %13 : vector<128x1xi32> to vector<128x1xi32>
    %15 = vector.broadcast %14 : vector<128x1xi32> to vector<128x128xi32>
    %c0_9 = arith.constant 0 : index
    %c0_10 = arith.constant 0 : index
    %16 = vector.load %arg6[%c0_9, %c0_10] : memref<1x128xi32, #tpu.memory_space<vmem>>, vector<1x128xi32>
    %17 = vector.shape_cast %16 : vector<1x128xi32> to vector<1x128xi32>
    %18 = vector.broadcast %17 : vector<1x128xi32> to vector<128x128xi32>
    %19 = arith.cmpi eq, %15, %18 : vector<128x128xi32>
    %20 = arith.cmpi sge, %11, %12 : vector<128x128xi32>
    %21 = arith.andi %19, %20 : vector<128x128xi1>
    %22 = tpu.concatenate %21, %21 in 0 : vector<128x128xi1>, vector<128x128xi1> -> vector<256x128xi1>
    %23 = vector.extract_strided_slice %10 {offsets = [0, 0], sizes = [128, 32], strides = [1, 1]} : vector<128x192xf32> to vector<128x32xf32>
    %24 = vector.extract_strided_slice %10 {offsets = [0, 32], sizes = [128, 32], strides = [1, 1]} : vector<128x192xf32> to vector<128x32xf32>
    %25 = tpu.concatenate %23, %24 in 0 : vector<128x32xf32>, vector<128x32xf32> -> vector<256x32xf32>
    %26 = arith.truncf %25 : vector<256x32xf32> to vector<256x32xbf16>
    %27 = vector.extract_strided_slice %10 {offsets = [0, 128], sizes = [128, 32], strides = [1, 1]} : vector<128x192xf32> to vector<128x32xf32>
    %28 = arith.truncf %27 : vector<128x32xf32> to vector<128x32xbf16>
    %29 = vector.extract_strided_slice %4 {offsets = [0, 0], sizes = [128, 32], strides = [1, 1]} : vector<128x64xf32> to vector<128x32xf32>
    %30 = arith.truncf %29 : vector<128x32xf32> to vector<128x32xbf16>
    %cst_11 = arith.constant dense<0.000000e+00> : vector<256x128xf32>
    %31 = tpu.matmul %26, %28, %cst_11 {dimension_numbers = #tpu.dot_dimension_numbers<[1], [1], [0], [0], [0, 0, 1, 0], [], []>} : vector<256x32xbf16>, vector<128x32xbf16>, vector<256x128xf32> -> vector<256x128xf32>
    %cst_12 = arith.constant -1.000000e+30 : f32
    %32 = vector.broadcast %cst_12 : f32 to vector<256x128xf32>
    %33 = arith.select %22, %31, %32 : vector<256x128xi1>, vector<256x128xf32>
    %cst_13 = arith.constant dense<0xFF800000> : vector<256xf32>
    %34 = vector.multi_reduction <maximumf>, %33, %cst_13 [1] : vector<256x128xf32> to vector<256xf32>
    %35 = vector.shape_cast %34 : vector<256xf32> to vector<256x1xf32>
    %36 = vector.broadcast %35 : vector<256x1xf32> to vector<256x128xf32>
    %37 = arith.subf %33, %36 : vector<256x128xf32>
    %38 = math.exp %37 : vector<256x128xf32>
    %cst_14 = arith.constant dense<0.000000e+00> : vector<256xf32>
    %39 = vector.multi_reduction <add>, %38, %cst_14 [1] : vector<256x128xf32> to vector<256xf32>
    %40 = vector.shape_cast %39 : vector<256xf32> to vector<256x1xf32>
    %41 = arith.truncf %38 : vector<256x128xf32> to vector<256x128xbf16>
    %cst_15 = arith.constant dense<0.000000e+00> : vector<256x32xf32>
    %42 = tpu.matmul %41, %30, %cst_15 {dimension_numbers = #tpu.dot_dimension_numbers<[1], [0], [0], [1], [0, 0, 1, 1], [], []>} : vector<256x128xbf16>, vector<128x32xbf16>, vector<256x32xf32> -> vector<256x32xf32>
    %43 = tpu.reciprocal %40 {approx = true} : vector<256x1xf32> -> vector<256x1xf32>
    %44 = vector.broadcast %43 : vector<256x1xf32> to vector<256x32xf32>
    %45 = arith.mulf %42, %44 : vector<256x32xf32>
    %46 = vector.extract_strided_slice %45 {offsets = [0, 0], sizes = [128, 32], strides = [1, 1]} : vector<256x32xf32> to vector<128x32xf32>
    %47 = arith.truncf %46 : vector<128x32xf32> to vector<128x32xbf16>
    %c0_16 = arith.constant 0 : index
    %c0_17 = arith.constant 0 : index
    %48 = vector.load %arg8[%c0_16, %c0_17] : memref<128x128xbf16, #tpu.memory_space<vmem>>, vector<128x32xbf16>
    tpu.vector_store %arg8[%c0_16, %c0_17], %47 {strides = array<i32>} : memref<128x128xbf16, #tpu.memory_space<vmem>>, vector<128x32xbf16>,
    %49 = vector.extract_strided_slice %45 {offsets = [128, 0], sizes = [128, 32], strides = [1, 1]} : vector<256x32xf32> to vector<128x32xf32>
    %50 = arith.truncf %49 : vector<128x32xf32> to vector<128x32xbf16>
    %c0_18 = arith.constant 0 : index
    %c32 = arith.constant 32 : index
    %51 = vector.load %arg8[%c0_18, %c32] : memref<128x128xbf16, #tpu.memory_space<vmem>>, vector<128x32xbf16>
    tpu.vector_store %arg8[%c0_18, %c32], %50 {strides = array<i32>} : memref<128x128xbf16, #tpu.memory_space<vmem>>, vector<128x32xbf16>,
    %52 = vector.extract_strided_slice %10 {offsets = [0, 64], sizes = [128, 32], strides = [1, 1]} : vector<128x192xf32> to vector<128x32xf32>
    %53 = vector.extract_strided_slice %10 {offsets = [0, 96], sizes = [128, 32], strides = [1, 1]} : vector<128x192xf32> to vector<128x32xf32>
    %54 = tpu.concatenate %52, %53 in 0 : vector<128x32xf32>, vector<128x32xf32> -> vector<256x32xf32>
    %55 = arith.truncf %54 : vector<256x32xf32> to vector<256x32xbf16>
    %56 = vector.extract_strided_slice %10 {offsets = [0, 160], sizes = [128, 32], strides = [1, 1]} : vector<128x192xf32> to vector<128x32xf32>
    %57 = arith.truncf %56 : vector<128x32xf32> to vector<128x32xbf16>
    %58 = vector.extract_strided_slice %4 {offsets = [0, 32], sizes = [128, 32], strides = [1, 1]} : vector<128x64xf32> to vector<128x32xf32>
    %59 = arith.truncf %58 : vector<128x32xf32> to vector<128x32xbf16>
    %cst_19 = arith.constant dense<0.000000e+00> : vector<256x128xf32>
    %60 = tpu.matmul %55, %57, %cst_19 {dimension_numbers = #tpu.dot_dimension_numbers<[1], [1], [0], [0], [0, 0, 1, 0], [], []>} : vector<256x32xbf16>, vector<128x32xbf16>, vector<256x128xf32> -> vector<256x128xf32>
    %cst_20 = arith.constant -1.000000e+30 : f32
    %61 = vector.broadcast %cst_20 : f32 to vector<256x128xf32>
    %62 = arith.select %22, %60, %61 : vector<256x128xi1>, vector<256x128xf32>
    %cst_21 = arith.constant dense<0xFF800000> : vector<256xf32>
    %63 = vector.multi_reduction <maximumf>, %62, %cst_21 [1] : vector<256x128xf32> to vector<256xf32>
    %64 = vector.shape_cast %63 : vector<256xf32> to vector<256x1xf32>
    %65 = vector.broadcast %64 : vector<256x1xf32> to vector<256x128xf32>
    %66 = arith.subf %62, %65 : vector<256x128xf32>
    %67 = math.exp %66 : vector<256x128xf32>
    %cst_22 = arith.constant dense<0.000000e+00> : vector<256xf32>
    %68 = vector.multi_reduction <add>, %67, %cst_22 [1] : vector<256x128xf32> to vector<256xf32>
    %69 = vector.shape_cast %68 : vector<256xf32> to vector<256x1xf32>
    %70 = arith.truncf %67 : vector<256x128xf32> to vector<256x128xbf16>
    %cst_23 = arith.constant dense<0.000000e+00> : vector<256x32xf32>
    %71 = tpu.matmul %70, %59, %cst_23 {dimension_numbers = #tpu.dot_dimension_numbers<[1], [0], [0], [1], [0, 0, 1, 1], [], []>} : vector<256x128xbf16>, vector<128x32xbf16>, vector<256x32xf32> -> vector<256x32xf32>
    %72 = tpu.reciprocal %69 {approx = true} : vector<256x1xf32> -> vector<256x1xf32>
    %73 = vector.broadcast %72 : vector<256x1xf32> to vector<256x32xf32>
    %74 = arith.mulf %71, %73 : vector<256x32xf32>
    %75 = vector.extract_strided_slice %74 {offsets = [0, 0], sizes = [128, 32], strides = [1, 1]} : vector<256x32xf32> to vector<128x32xf32>
    %76 = arith.truncf %75 : vector<128x32xf32> to vector<128x32xbf16>
    %c0_24 = arith.constant 0 : index
    %c64 = arith.constant 64 : index
    %77 = vector.load %arg8[%c0_24, %c64] : memref<128x128xbf16, #tpu.memory_space<vmem>>, vector<128x32xbf16>
    tpu.vector_store %arg8[%c0_24, %c64], %76 {strides = array<i32>} : memref<128x128xbf16, #tpu.memory_space<vmem>>, vector<128x32xbf16>,
    %78 = vector.extract_strided_slice %74 {offsets = [128, 0], sizes = [128, 32], strides = [1, 1]} : vector<256x32xf32> to vector<128x32xf32>
    %79 = arith.truncf %78 : vector<128x32xf32> to vector<128x32xbf16>
    %c0_25 = arith.constant 0 : index
    %c96 = arith.constant 96 : index
    %80 = vector.load %arg8[%c0_25, %c96] : memref<128x128xbf16, #tpu.memory_space<vmem>>, vector<128x32xbf16>
    tpu.vector_store %arg8[%c0_25, %c96], %79 {strides = array<i32>} : memref<128x128xbf16, #tpu.memory_space<vmem>>, vector<128x32xbf16>,
    %c0_26 = arith.constant 0 : index
    %c0_27 = arith.constant 0 : index
    %81 = vector.load %arg8[%c0_26, %c0_27] : memref<128x128xbf16, #tpu.memory_space<vmem>>, vector<128x128xbf16>
    %c0_28 = arith.constant 0 : index
    %c0_29 = arith.constant 0 : index
    %82 = vector.load %arg2[%c0_28, %c0_29] : memref<128x64xbf16, #tpu.memory_space<vmem>>, vector<128x64xbf16>
    %cst_30 = arith.constant dense<0.000000e+00> : vector<128x64xf32>
    %83 = tpu.matmul %81, %82, %cst_30 {dimension_numbers = #tpu.dot_dimension_numbers<[1], [0], [0], [1], [0, 0, 1, 1], [], []>} : vector<128x128xbf16>, vector<128x64xbf16>, vector<128x64xf32> -> vector<128x64xf32>
    %84 = arith.truncf %83 : vector<128x64xf32> to vector<128x64xbf16>
    %c0_31 = arith.constant 0 : index
    %c0_32 = arith.constant 0 : index
    %85 = vector.load %arg7[%c0_31, %c0_32] : memref<128x64xbf16, #tpu.memory_space<vmem>>, vector<128x64xbf16>
    tpu.vector_store %arg7[%c0_31, %c0_32], %84 {strides = array<i32>} : memref<128x64xbf16, #tpu.memory_space<vmem>>, vector<128x64xbf16>,
    return
  }
}

</mosaic_0001>

<llo_original>
// kernel: self_attention_forward.1
$region0: #{self_attention_forward.1}
  #allocation0 [shape = 'u32[]', space=smem, size = 0x4, offset = 0x4, fixed_abs, tag = 'smem constant byte address 0x4 - core index']
  #allocation1 [shape = 'u32[144,128]{1,0:T(1,128)}', space=vmem, size = 0x12000, scoped, tag = 'internal scratch']
  #allocation2 [shape = 'bf16[128,128]{1,0:T(16,128)(2,1)}', space=vmem, size = 0x8000, scoped, tag = 'scratch operand']
  %s0 = inlined_call_operand.vmem [shape: bf16[128,64], index: 0, kind: input, shape index: {}]
  %s1 = inlined_call_operand.vmem [shape: bf16[64,448], index: 1, kind: input, shape index: {}]
  %s2 = inlined_call_operand.vmem [shape: bf16[128,64], index: 2, kind: input, shape index: {}]
  %s3 = inlined_call_operand.vmem [shape: f32[128,192], index: 3, kind: input, shape index: {}]
  %s4 = inlined_call_operand.vmem [shape: f32[128,192], index: 4, kind: input, shape index: {}]
  %s5 = inlined_call_operand.vmem [shape: s32[128,1], index: 5, kind: input, shape index: {}]
  %s6 = inlined_call_operand.vmem [shape: s32[1,128], index: 6, kind: input, shape index: {}]
  %s7 = inlined_call_operand.vmem [shape: bf16[128,64], index: 7, kind: output, shape index: {}]
  %s8 = sld [smem:[#allocation0]]
  $region38: #{self_attention_forward.1} parent=0
    _
  %s10 = ssub.s32 1, %s8
  %s11 = scalar_select 0, %s10, %s8
  // Predicated region
  $region2: #{self_attention_forward.1} parent=0 // pred_check
    _
  $region3: #{self_attention_forward.1} parent=0 // pred_check_branch
    %13 = sbr.rel (0) target = $region5
  $region4: #{self_attention_forward.1} parent=0 // pred_region
    _
  $region5: #{self_attention_forward.1} parent=0 // pred_fallthru
    _
  // Predicated region
  $region6: #{self_attention_forward.1} parent=0 // pred_check
    _
  $region7: #{self_attention_forward.1} parent=0 // pred_check_branch
    %15 = sbr.rel (0) target = $region9
  $region8: #{self_attention_forward.1} parent=0 // pred_region
    _
  $region9: #{self_attention_forward.1} parent=0 // pred_fallthru
    _
  // Predicated region
  $region10: #{self_attention_forward.1} parent=0 // pred_check
    _
  $region11: #{self_attention_forward.1} parent=0 // pred_check_branch
    %17 = sbr.rel (0) target = $region13
  $region12: #{self_attention_forward.1} parent=0 // pred_region
    _
  $region13: #{self_attention_forward.1} parent=0 // pred_fallthru
    _
  // Predicated region
  $region14: #{self_attention_forward.1} parent=0 // pred_check
    _
  $region15: #{self_attention_forward.1} parent=0 // pred_check_branch
    %19 = sbr.rel (0) target = $region17
  $region16: #{self_attention_forward.1} parent=0 // pred_region
    _
  $region17: #{self_attention_forward.1} parent=0 // pred_fallthru
    _
  // Predicated region
  $region18: #{self_attention_forward.1} parent=0 // pred_check
    _
  $region19: #{self_attention_forward.1} parent=0 // pred_check_branch
    %21 = sbr.rel (0) target = $region21
  $region20: #{self_attention_forward.1} parent=0 // pred_region
    _
  $region21: #{self_attention_forward.1} parent=0 // pred_fallthru
    _
  // Predicated region
  $region22: #{self_attention_forward.1} parent=0 // pred_check
    _
  $region23: #{self_attention_forward.1} parent=0 // pred_check_branch
    %23 = sbr.rel (0) target = $region25
  $region24: #{self_attention_forward.1} parent=0 // pred_region
    _
  $region25: #{self_attention_forward.1} parent=0 // pred_fallthru
    _
  // Predicated region
  $region26: #{self_attention_forward.1} parent=0 // pred_check
    _
  $region27: #{self_attention_forward.1} parent=0 // pred_check_branch
    %25 = sbr.rel (0) target = $region29
  $region28: #{self_attention_forward.1} parent=0 // pred_region
    _
  $region29: #{self_attention_forward.1} parent=0 // pred_fallthru
    _
  %v27 = vld [vmem:[%s0] sm:$0xf]
  %v28 = vld [vmem:[%s0 + $0x4] sm:$0xf]
  %v29 = vld [vmem:[%s0 + $0x8] sm:$0xf]
  %v30 = vld [vmem:[%s0 + $0xc] sm:$0xf]
  %v31 = vld [vmem:[%s0 + $0x10] sm:$0xf]
  %v32 = vld [vmem:[%s0 + $0x14] sm:$0xf]
  %v33 = vld [vmem:[%s0 + $0x18] sm:$0xf]
  %v34 = vld [vmem:[%s0 + $0x1c] sm:$0xf]
  %v35 = vld [vmem:[%s0 + $0x20] sm:$0xf]
  %v36 = vld [vmem:[%s0 + $0x24] sm:$0xf]
  %v37 = vld [vmem:[%s0 + $0x28] sm:$0xf]
  %v38 = vld [vmem:[%s0 + $0x2c] sm:$0xf]
  %v39 = vld [vmem:[%s0 + $0x30] sm:$0xf]
  %v40 = vld [vmem:[%s0 + $0x34] sm:$0xf]
  %v41 = vld [vmem:[%s0 + $0x38] sm:$0xf]
  %v42 = vld [vmem:[%s0 + $0x3c] sm:$0xf]
  %v43 = vld [vmem:[%s1] sm:$0xff]
  %v44 = vld [vmem:[%s1 + $0x8] sm:$0xff]
  %v45 = vld [vmem:[%s1 + $0x10] sm:$0xff]
  %v46 = vld [vmem:[%s1 + $0x18] sm:$0xff]
  %v47 = vld [vmem:[%s1 + $0x20] sm:$0xff]
  %v48 = vld [vmem:[%s1 + $0x28] sm:$0xff]
  %v49 = vld [vmem:[%s1 + $0x30] sm:$0xff]
  %v50 = vld [vmem:[%s1 + $0x38] sm:$0xff]
  %v51 = vld [vmem:[%s1 + $0x40] sm:$0xff]
  %v52 = vld [vmem:[%s1 + $0x48] sm:$0xff]
  %v53 = vld [vmem:[%s1 + $0x50] sm:$0xff]
  %v54 = vld [vmem:[%s1 + $0x58] sm:$0xff]
  %v55 = vld [vmem:[%s1 + $0x60] sm:$0xff]
  %v56 = vld [vmem:[%s1 + $0x68] sm:$0xff]
  %v57 = vld [vmem:[%s1 + $0x70] sm:$0xff]
  %v58 = vld [vmem:[%s1 + $0x78] sm:$0xff]
  %v75 = vunpack.c.l.b16 %v27
  %v76 = vunpack.c.l.b16 %v28
  %v77 = vunpack.c.l.b16 %v29
  %v78 = vunpack.c.l.b16 %v30
  %v79 = vunpack.c.l.b16 %v31
  %v80 = vunpack.c.l.b16 %v32
  %v81 = vunpack.c.l.b16 %v33
  %v82 = vunpack.c.l.b16 %v34
  %v83 = vunpack.c.l.b16 %v35
  %v84 = vunpack.c.l.b16 %v36
  %v85 = vunpack.c.l.b16 %v37
  %v86 = vunpack.c.l.b16 %v38
  %v87 = vunpack.c.l.b16 %v39
  %v88 = vunpack.c.l.b16 %v40
  %v89 = vunpack.c.l.b16 %v41
  %v90 = vunpack.c.l.b16 %v42
  %v91 = vpack.c.b16 %v76, %v75
  %v92 = vpack.c.b16 %v78, %v77
  %v93 = vpack.c.b16 %v80, %v79
  %v94 = vpack.c.b16 %v82, %v81
  %v95 = vpack.c.b16 %v84, %v83
  %v96 = vpack.c.b16 %v86, %v85
  %v97 = vpack.c.b16 %v88, %v87
  %v98 = vpack.c.b16 %v90, %v89
  %v115 = vunpack.c.l.b16 %v43
  %v116 = vunpack.c.h.b16 %v43
  %v117 = vunpack.c.l.b16 %v44
  %v118 = vunpack.c.h.b16 %v44
  %v119 = vunpack.c.l.b16 %v45
  %v120 = vunpack.c.h.b16 %v45
  %v121 = vunpack.c.l.b16 %v46
  %v122 = vunpack.c.h.b16 %v46
  %v123 = vunpack.c.l.b16 %v47
  %v124 = vunpack.c.h.b16 %v47
  %v125 = vunpack.c.l.b16 %v48
  %v126 = vunpack.c.h.b16 %v48
  %v127 = vunpack.c.l.b16 %v49
  %v128 = vunpack.c.h.b16 %v49
  %v129 = vunpack.c.l.b16 %v50
  %v130 = vunpack.c.h.b16 %v50
  %v131 = vunpack.c.l.b16 %v51
  %v132 = vunpack.c.h.b16 %v51
  %v133 = vunpack.c.l.b16 %v52
  %v134 = vunpack.c.h.b16 %v52
  %v135 = vunpack.c.l.b16 %v53
  %v136 = vunpack.c.h.b16 %v53
  %v137 = vunpack.c.l.b16 %v54
  %v138 = vunpack.c.h.b16 %v54
  %v139 = vunpack.c.l.b16 %v55
  %v140 = vunpack.c.h.b16 %v55
  %v141 = vunpack.c.l.b16 %v56
  %v142 = vunpack.c.h.b16 %v56
  %v143 = vunpack.c.l.b16 %v57
  %v144 = vunpack.c.h.b16 %v57
  %v145 = vunpack.c.l.b16 %v58
  %v146 = vunpack.c.h.b16 %v58
  %v147 = vpack.c.b16 %v119, %v115
  %v148 = vpack.c.b16 %v120, %v116
  %v149 = vpack.c.b16 %v121, %v117
  %v150 = vpack.c.b16 %v122, %v118
  %v151 = vpack.c.b16 %v127, %v123
  %v152 = vpack.c.b16 %v128, %v124
  %v153 = vpack.c.b16 %v129, %v125
  %v154 = vpack.c.b16 %v130, %v126
  %v155 = vpack.c.b16 %v135, %v131
  %v156 = vpack.c.b16 %v136, %v132
  %v157 = vpack.c.b16 %v137, %v133
  %v158 = vpack.c.b16 %v138, %v134
  %v159 = vpack.c.b16 %v143, %v139
  %v160 = vpack.c.b16 %v144, %v140
  %v161 = vpack.c.b16 %v145, %v141
  %v162 = vpack.c.b16 %v146, %v142
  %vm179 = vcmask 523264
  %v181 = vsel %vm179, %v91, 0
  %v184 = vsel %vm179, %v92, 0
  %v187 = vsel %vm179, %v93, 0
  %v190 = vsel %vm179, %v94, 0
  %v193 = vsel %vm179, %v95, 0
  %v196 = vsel %vm179, %v96, 0
  %v199 = vsel %vm179, %v97, 0
  %v202 = vsel %vm179, %v98, 0
  %204 = vmatprep.subr.bf16.mxu0 %v148
  %205 = vmatpush1.bf16.msra.mxu0 %v147
  %206 = vmatprep.subr.bf16.mxu0 %v152
  %207 = vmatpush1.bf16.msra.mxu0 %v151
  %208 = vmatprep.subr.bf16.mxu0 %v156
  %209 = vmatpush1.bf16.msra.mxu0 %v155
  %210 = vmatprep.subr.bf16.mxu0 %v160
  %211 = vmatpush1.bf16.msra.mxu0 %v159
  %212 = vmatprep.subr.bf16.mxu0 0
  %213 = vmatpush1.bf16.msra.mxu0 0
  %214 = vmatprep.subr.bf16.mxu0 0
  %215 = vmatpush1.bf16.msra.mxu0 0
  %216 = vmatprep.subr.bf16.mxu0 0
  %217 = vmatpush1.bf16.msra.mxu0 0
  %218 = vmatprep.subr.bf16.mxu0 0
  %219 = vmatpush1.bf16.msra.mxu0 0
  %220 = vmatprep.subr.bf16.mxu0 0
  %221 = vmatpush1.bf16.msra.mxu0 0
  %222 = vmatprep.subr.bf16.mxu0 0
  %223 = vmatpush1.bf16.msra.mxu0 0
  %224 = vmatprep.subr.bf16.mxu0 0
  %225 = vmatpush1.bf16.msra.mxu0 0
  %226 = vmatprep.subr.bf16.mxu0 0
  %227 = vmatpush1.bf16.msra.mxu0 0
  %228 = vmatprep.subr.bf16.mxu0 0
  %229 = vmatpush1.bf16.msra.mxu0 0
  %230 = vmatprep.subr.bf16.mxu0 0
  %231 = vmatpush1.bf16.msra.mxu0 0
  %232 = vmatprep.subr.bf16.mxu0 0
  %233 = vmatpush1.bf16.msra.mxu0 0
  %234 = vmatprep.subr.bf16.mxu0 0
  %235 = vmatpush1.bf16.msra.mxu0 0
  %236 = vmatprep.mubr.bf16.mxu0 0
  %237 = vmatmul.mubr.bf16.gmra.mrb[0].mxu0 %v181
  %v238 = vpop.f32.mrb[0].mxu0
  %v239 = vadd.f32 0.0, %v238
  %v240 = vpop.f32.mrb[0].mxu0
  %v241 = vadd.f32 0.0, %v240
  %v242 = vpop.f32.mrb[0].mxu0
  %v243 = vadd.f32 0.0, %v242
  %v244 = vpop.f32.mrb[0].mxu0
  %v245 = vadd.f32 0.0, %v244
  %246 = vmatprep.mubr.bf16.mxu0 0
  %247 = vmatmul.mubr.bf16.gmra.mrb[0].mxu0 %v184
  %v248 = vpop.f32.mrb[0].mxu0
  %v249 = vadd.f32 0.0, %v248
  %v250 = vpop.f32.mrb[0].mxu0
  %v251 = vadd.f32 0.0, %v250
  %v252 = vpop.f32.mrb[0].mxu0
  %v253 = vadd.f32 0.0, %v252
  %v254 = vpop.f32.mrb[0].mxu0
  %v255 = vadd.f32 0.0, %v254
  %256 = vmatprep.mubr.bf16.mxu0 0
  %257 = vmatmul.mubr.bf16.gmra.mrb[0].mxu0 %v187
  %v258 = vpop.f32.mrb[0].mxu0
  %v259 = vadd.f32 0.0, %v258
  %v260 = vpop.f32.mrb[0].mxu0
  %v261 = vadd.f32 0.0, %v260
  %v262 = vpop.f32.mrb[0].mxu0
  %v263 = vadd.f32 0.0, %v262
  %v264 = vpop.f32.mrb[0].mxu0
  %v265 = vadd.f32 0.0, %v264
  %266 = vmatprep.mubr.bf16.mxu0 0
  %267 = vmatmul.mubr.bf16.gmra.mrb[0].mxu0 %v190
  %v268 = vpop.f32.mrb[0].mxu0
  %v269 = vadd.f32 0.0, %v268
  %v270 = vpop.f32.mrb[0].mxu0
  %v271 = vadd.f32 0.0, %v270
  %v272 = vpop.f32.mrb[0].mxu0
  %v273 = vadd.f32 0.0, %v272
  %v274 = vpop.f32.mrb[0].mxu0
  %v275 = vadd.f32 0.0, %v274
  %276 = vmatprep.mubr.bf16.mxu0 0
  %277 = vmatmul.mubr.bf16.gmra.mrb[0].mxu0 %v193
  %v278 = vpop.f32.mrb[0].mxu0
  %v279 = vadd.f32 0.0, %v278
  %v280 = vpop.f32.mrb[0].mxu0
  %v281 = vadd.f32 0.0, %v280
  %v282 = vpop.f32.mrb[0].mxu0
  %v283 = vadd.f32 0.0, %v282
  %v284 = vpop.f32.mrb[0].mxu0
  %v285 = vadd.f32 0.0, %v284
  %286 = vmatprep.mubr.bf16.mxu0 0
  %287 = vmatmul.mubr.bf16.gmra.mrb[0].mxu0 %v196
  %v288 = vpop.f32.mrb[0].mxu0
  %v289 = vadd.f32 0.0, %v288
  %v290 = vpop.f32.mrb[0].mxu0
  %v291 = vadd.f32 0.0, %v290
  %v292 = vpop.f32.mrb[0].mxu0
  %v293 = vadd.f32 0.0, %v292
  %v294 = vpop.f32.mrb[0].mxu0
  %v295 = vadd.f32 0.0, %v294
  %296 = vmatprep.mubr.bf16.mxu0 0
  %297 = vmatmul.mubr.bf16.gmra.mrb[0].mxu0 %v199
  %v298 = vpop.f32.mrb[0].mxu0
  %v299 = vadd.f32 0.0, %v298
  %v300 = vpop.f32.mrb[0].mxu0
  %v301 = vadd.f32 0.0, %v300
  %v302 = vpop.f32.mrb[0].mxu0
  %v303 = vadd.f32 0.0, %v302
  %v304 = vpop.f32.mrb[0].mxu0
  %v305 = vadd.f32 0.0, %v304
  %306 = vmatprep.mubr.bf16.mxu0 0
  %307 = vmatmul.mubr.bf16.gmra.mrb[0].mxu0 %v202
  %v308 = vpop.f32.mrb[0].mxu0
  %v309 = vadd.f32 0.0, %v308
  %v310 = vpop.f32.mrb[0].mxu0
  %v311 = vadd.f32 0.0, %v310
  %v312 = vpop.f32.mrb[0].mxu0
  %v313 = vadd.f32 0.0, %v312
  %v314 = vpop.f32.mrb[0].mxu0
  %v315 = vadd.f32 0.0, %v314
  %316 = vdwg.mxu0
  %317 = vmatprep.subr.bf16.mxu0 %v150
  %318 = vmatpush1.bf16.msra.mxu0 %v149
  %319 = vmatprep.subr.bf16.mxu0 %v154
  %320 = vmatpush1.bf16.msra.mxu0 %v153
  %321 = vmatprep.subr.bf16.mxu0 %v158
  %322 = vmatpush1.bf16.msra.mxu0 %v157
  %323 = vmatprep.subr.bf16.mxu0 %v162
  %324 = vmatpush1.bf16.msra.mxu0 %v161
  %325 = vmatprep.subr.bf16.mxu0 0
  %326 = vmatpush1.bf16.msra.mxu0 0
  %327 = vmatprep.subr.bf16.mxu0 0
  %328 = vmatpush1.bf16.msra.mxu0 0
  %329 = vmatprep.subr.bf16.mxu0 0
  %330 = vmatpush1.bf16.msra.mxu0 0
  %331 = vmatprep.subr.bf16.mxu0 0
  %332 = vmatpush1.bf16.msra.mxu0 0
  %333 = vmatprep.subr.bf16.mxu0 0
  %334 = vmatpush1.bf16.msra.mxu0 0
  %335 = vmatprep.subr.bf16.mxu0 0
  %336 = vmatpush1.bf16.msra.mxu0 0
  %337 = vmatprep.subr.bf16.mxu0 0
  %338 = vmatpush1.bf16.msra.mxu0 0
  %339 = vmatprep.subr.bf16.mxu0 0
  %340 = vmatpush1.bf16.msra.mxu0 0
  %341 = vmatprep.subr.bf16.mxu0 0
  %342 = vmatpush1.bf16.msra.mxu0 0
  %343 = vmatprep.subr.bf16.mxu0 0
  %344 = vmatpush1.bf16.msra.mxu0 0
  %345 = vmatprep.subr.bf16.mxu0 0
  %346 = vmatpush1.bf16.msra.mxu0 0
  %347 = vmatprep.subr.bf16.mxu0 0
  %348 = vmatpush1.bf16.msra.mxu0 0
  %349 = vmatprep.mubr.bf16.mxu0 0
  %350 = vmatmul.mubr.bf16.gmra.mrb[0].mxu0 %v181
  %v351 = vpop.f32.mrb[0].mxu0
  %v352 = vadd.f32 0.0, %v351
  %v353 = vpop.f32.mrb[0].mxu0
  %v354 = vadd.f32 0.0, %v353
  %v355 = vpop.f32.mrb[0].mxu0
  %v356 = vadd.f32 0.0, %v355
  %v357 = vpop.f32.mrb[0].mxu0
  %v358 = vadd.f32 0.0, %v357
  %359 = vmatprep.mubr.bf16.mxu0 0
  %360 = vmatmul.mubr.bf16.gmra.mrb[0].mxu0 %v184
  %v361 = vpop.f32.mrb[0].mxu0
  %v362 = vadd.f32 0.0, %v361
  %v363 = vpop.f32.mrb[0].mxu0
  %v364 = vadd.f32 0.0, %v363
  %v365 = vpop.f32.mrb[0].mxu0
  %v366 = vadd.f32 0.0, %v365
  %v367 = vpop.f32.mrb[0].mxu0
  %v368 = vadd.f32 0.0, %v367
  %369 = vmatprep.mubr.bf16.mxu0 0
  %370 = vmatmul.mubr.bf16.gmra.mrb[0].mxu0 %v187
  %v371 = vpop.f32.mrb[0].mxu0
  %v372 = vadd.f32 0.0, %v371
  %v373 = vpop.f32.mrb[0].mxu0
  %v374 = vadd.f32 0.0, %v373
  %v375 = vpop.f32.mrb[0].mxu0
  %v376 = vadd.f32 0.0, %v375
  %v377 = vpop.f32.mrb[0].mxu0
  %v378 = vadd.f32 0.0, %v377
  %379 = vmatprep.mubr.bf16.mxu0 0
  %380 = vmatmul.mubr.bf16.gmra.mrb[0].mxu0 %v190
  %v381 = vpop.f32.mrb[0].mxu0
  %v382 = vadd.f32 0.0, %v381
  %v383 = vpop.f32.mrb[0].mxu0
  %v384 = vadd.f32 0.0, %v383
  %v385 = vpop.f32.mrb[0].mxu0
  %v386 = vadd.f32 0.0, %v385
  %v387 = vpop.f32.mrb[0].mxu0
  %v388 = vadd.f32 0.0, %v387
  %389 = vmatprep.mubr.bf16.mxu0 0
  %390 = vmatmul.mubr.bf16.gmra.mrb[0].mxu0 %v193
  %v391 = vpop.f32.mrb[0].mxu0
  %v392 = vadd.f32 0.0, %v391
  %v393 = vpop.f32.mrb[0].mxu0
  %v394 = vadd.f32 0.0, %v393
  %v395 = vpop.f32.mrb[0].mxu0
  %v396 = vadd.f32 0.0, %v395
  %v397 = vpop.f32.mrb[0].mxu0
  %v398 = vadd.f32 0.0, %v397
  %399 = vmatprep.mubr.bf16.mxu0 0
  %400 = vmatmul.mubr.bf16.gmra.mrb[0].mxu0 %v196
  %v401 = vpop.f32.mrb[0].mxu0
  %v402 = vadd.f32 0.0, %v401
  %v403 = vpop.f32.mrb[0].mxu0
  %v404 = vadd.f32 0.0, %v403
  %v405 = vpop.f32.mrb[0].mxu0
  %v406 = vadd.f32 0.0, %v405
  %v407 = vpop.f32.mrb[0].mxu0
  %v408 = vadd.f32 0.0, %v407
  %409 = vmatprep.mubr.bf16.mxu0 0
  %410 = vmatmul.mubr.bf16.gmra.mrb[0].mxu0 %v199
  %v411 = vpop.f32.mrb[0].mxu0
  %v412 = vadd.f32 0.0, %v411
  %v413 = vpop.f32.mrb[0].mxu0
  %v414 = vadd.f32 0.0, %v413
  %v415 = vpop.f32.mrb[0].mxu0
  %v416 = vadd.f32 0.0, %v415
  %v417 = vpop.f32.mrb[0].mxu0
  %v418 = vadd.f32 0.0, %v417
  %419 = vmatprep.mubr.bf16.mxu0 0
  %420 = vmatmul.mubr.bf16.gmra.mrb[0].mxu0 %v202
  %v421 = vpop.f32.mrb[0].mxu0
  %v422 = vadd.f32 0.0, %v421
  %v423 = vpop.f32.mrb[0].mxu0
  %v424 = vadd.f32 0.0, %v423
  %v425 = vpop.f32.mrb[0].mxu0
  %v426 = vadd.f32 0.0, %v425
  %v427 = vpop.f32.mrb[0].mxu0
  %v428 = vadd.f32 0.0, %v427
  %429 = vdwg.mxu0
  %v430 = vld [vmem:[%s3] sm:$0xff]
  %v431 = vld [vmem:[%s3 + $0x8] sm:$0xff]
  %v432 = vld [vmem:[%s3 + $0x10] sm:$0xff]
  %v433 = vld [vmem:[%s3 + $0x18] sm:$0xff]
  %v434 = vld [vmem:[%s3 + $0x20] sm:$0xff]
  %v435 = vld [vmem:[%s3 + $0x28] sm:$0xff]
  %v436 = vld [vmem:[%s3 + $0x30] sm:$0xff]
  %v437 = vld [vmem:[%s3 + $0x38] sm:$0xff]
  %v438 = vld [vmem:[%s3 + $0x40] sm:$0xff]
  %v439 = vld [vmem:[%s3 + $0x48] sm:$0xff]
  %v440 = vld [vmem:[%s3 + $0x50] sm:$0xff]
  %v441 = vld [vmem:[%s3 + $0x58] sm:$0xff]
  %v442 = vld [vmem:[%s3 + $0x60] sm:$0xff]
  %v443 = vld [vmem:[%s3 + $0x68] sm:$0xff]
  %v444 = vld [vmem:[%s3 + $0x70] sm:$0xff]
  %v445 = vld [vmem:[%s3 + $0x78] sm:$0xff]
  %v446 = vld [vmem:[%s3 + $0x80] sm:$0xff]
  %v447 = vld [vmem:[%s3 + $0x88] sm:$0xff]
  %v448 = vld [vmem:[%s3 + $0x90] sm:$0xff]
  %v449 = vld [vmem:[%s3 + $0x98] sm:$0xff]
  %v450 = vld [vmem:[%s3 + $0xa0] sm:$0xff]
  %v451 = vld [vmem:[%s3 + $0xa8] sm:$0xff]
  %v452 = vld [vmem:[%s3 + $0xb0] sm:$0xff]
  %v453 = vld [vmem:[%s3 + $0xb8] sm:$0xff]
  %v454 = vld [vmem:[%s3 + $0xc0] sm:$0xff]
  %v455 = vld [vmem:[%s3 + $0xc8] sm:$0xff]
  %v456 = vld [vmem:[%s3 + $0xd0] sm:$0xff]
  %v457 = vld [vmem:[%s3 + $0xd8] sm:$0xff]
  %v458 = vld [vmem:[%s3 + $0xe0] sm:$0xff]
  %v459 = vld [vmem:[%s3 + $0xe8] sm:$0xff]
  %v460 = vld [vmem:[%s3 + $0xf0] sm:$0xff]
  %v461 = vld [vmem:[%s3 + $0xf8] sm:$0xff]
  %v462 = vmul.f32 %v239, %v430
  %v463 = vmul.f32 %v241, %v431
  %v464 = vmul.f32 %v243, %v432
  %v465 = vmul.f32 %v245, %v433
  %v466 = vmul.f32 %v249, %v434
  %v467 = vmul.f32 %v251, %v435
  %v468 = vmul.f32 %v253, %v436
  %v469 = vmul.f32 %v255, %v437
  %v470 = vmul.f32 %v259, %v438
  %v471 = vmul.f32 %v261, %v439
  %v472 = vmul.f32 %v263, %v440
  %v473 = vmul.f32 %v265, %v441
  %v474 = vmul.f32 %v269, %v442
  %v475 = vmul.f32 %v271, %v443
  %v476 = vmul.f32 %v273, %v444
  %v477 = vmul.f32 %v275, %v445
  %v478 = vmul.f32 %v279, %v446
  %v479 = vmul.f32 %v281, %v447
  %v480 = vmul.f32 %v283, %v448
  %v481 = vmul.f32 %v285, %v449
  %v482 = vmul.f32 %v289, %v450
  %v483 = vmul.f32 %v291, %v451
  %v484 = vmul.f32 %v293, %v452
  %v485 = vmul.f32 %v295, %v453
  %v486 = vmul.f32 %v299, %v454
  %v487 = vmul.f32 %v301, %v455
  %v488 = vmul.f32 %v303, %v456
  %v489 = vmul.f32 %v305, %v457
  %v490 = vmul.f32 %v309, %v458
  %v491 = vmul.f32 %v311, %v459
  %v492 = vmul.f32 %v313, %v460
  %v493 = vmul.f32 %v315, %v461
  %v494 = vld [vmem:[%s4] sm:$0xff]
  %v495 = vld [vmem:[%s4 + $0x8] sm:$0xff]
  %v496 = vld [vmem:[%s4 + $0x10] sm:$0xff]
  %v497 = vld [vmem:[%s4 + $0x18] sm:$0xff]
  %v498 = vld [vmem:[%s4 + $0x20] sm:$0xff]
  %v499 = vld [vmem:[%s4 + $0x28] sm:$0xff]
  %v500 = vld [vmem:[%s4 + $0x30] sm:$0xff]
  %v501 = vld [vmem:[%s4 + $0x38] sm:$0xff]
  %v502 = vld [vmem:[%s4 + $0x40] sm:$0xff]
  %v503 = vld [vmem:[%s4 + $0x48] sm:$0xff]
  %v504 = vld [vmem:[%s4 + $0x50] sm:$0xff]
  %v505 = vld [vmem:[%s4 + $0x58] sm:$0xff]
  %v506 = vld [vmem:[%s4 + $0x60] sm:$0xff]
  %v507 = vld [vmem:[%s4 + $0x68] sm:$0xff]
  %v508 = vld [vmem:[%s4 + $0x70] sm:$0xff]
  %v509 = vld [vmem:[%s4 + $0x78] sm:$0xff]
  %v510 = vld [vmem:[%s4 + $0x80] sm:$0xff]
  %v511 = vld [vmem:[%s4 + $0x88] sm:$0xff]
  %v512 = vld [vmem:[%s4 + $0x90] sm:$0xff]
  %v513 = vld [vmem:[%s4 + $0x98] sm:$0xff]
  %v514 = vld [vmem:[%s4 + $0xa0] sm:$0xff]
  %v515 = vld [vmem:[%s4 + $0xa8] sm:$0xff]
  %v516 = vld [vmem:[%s4 + $0xb0] sm:$0xff]
  %v517 = vld [vmem:[%s4 + $0xb8] sm:$0xff]
  %v518 = vld [vmem:[%s4 + $0xc0] sm:$0xff]
  %v519 = vld [vmem:[%s4 + $0xc8] sm:$0xff]
  %v520 = vld [vmem:[%s4 + $0xd0] sm:$0xff]
  %v521 = vld [vmem:[%s4 + $0xd8] sm:$0xff]
  %v522 = vld [vmem:[%s4 + $0xe0] sm:$0xff]
  %v523 = vld [vmem:[%s4 + $0xe8] sm:$0xff]
  %v524 = vld [vmem:[%s4 + $0xf0] sm:$0xff]
  %v525 = vld [vmem:[%s4 + $0xf8] sm:$0xff]
  %v526 = vmul.f32 %v352, %v494
  %v527 = vmul.f32 %v354, %v495
  %v528 = vmul.f32 %v356, %v496
  %v529 = vmul.f32 %v358, %v497
  %v530 = vmul.f32 %v362, %v498
  %v531 = vmul.f32 %v364, %v499
  %v532 = vmul.f32 %v366, %v500
  %v533 = vmul.f32 %v368, %v501
  %v534 = vmul.f32 %v372, %v502
  %v535 = vmul.f32 %v374, %v503
  %v536 = vmul.f32 %v376, %v504
  %v537 = vmul.f32 %v378, %v505
  %v538 = vmul.f32 %v382, %v506
  %v539 = vmul.f32 %v384, %v507
  %v540 = vmul.f32 %v386, %v508
  %v541 = vmul.f32 %v388, %v509
  %v542 = vmul.f32 %v392, %v510
  %v543 = vmul.f32 %v394, %v511
  %v544 = vmul.f32 %v396, %v512
  %v545 = vmul.f32 %v398, %v513
  %v546 = vmul.f32 %v402, %v514
  %v547 = vmul.f32 %v404, %v515
  %v548 = vmul.f32 %v406, %v516
  %v549 = vmul.f32 %v408, %v517
  %v550 = vmul.f32 %v412, %v518
  %v551 = vmul.f32 %v414, %v519
  %v552 = vmul.f32 %v416, %v520
  %v553 = vmul.f32 %v418, %v521
  %v554 = vmul.f32 %v422, %v522
  %v555 = vmul.f32 %v424, %v523
  %v556 = vmul.f32 %v426, %v524
  %v557 = vmul.f32 %v428, %v525
  %v558 = vadd.f32 %v462, %v526
  %v559 = vadd.f32 %v463, %v527
  %v560 = vadd.f32 %v464, %v528
  %v561 = vadd.f32 %v465, %v529
  %v562 = vadd.f32 %v466, %v530
  %v563 = vadd.f32 %v467, %v531
  %v564 = vadd.f32 %v468, %v532
  %v565 = vadd.f32 %v469, %v533
  %v566 = vadd.f32 %v470, %v534
  %v567 = vadd.f32 %v471, %v535
  %v568 = vadd.f32 %v472, %v536
  %v569 = vadd.f32 %v473, %v537
  %v570 = vadd.f32 %v474, %v538
  %v571 = vadd.f32 %v475, %v539
  %v572 = vadd.f32 %v476, %v540
  %v573 = vadd.f32 %v477, %v541
  %v574 = vadd.f32 %v478, %v542
  %v575 = vadd.f32 %v479, %v543
  %v576 = vadd.f32 %v480, %v544
  %v577 = vadd.f32 %v481, %v545
  %v578 = vadd.f32 %v482, %v546
  %v579 = vadd.f32 %v483, %v547
  %v580 = vadd.f32 %v484, %v548
  %v581 = vadd.f32 %v485, %v549
  %v582 = vadd.f32 %v486, %v550
  %v583 = vadd.f32 %v487, %v551
  %v584 = vadd.f32 %v488, %v552
  %v585 = vadd.f32 %v489, %v553
  %v586 = vadd.f32 %v490, %v554
  %v587 = vadd.f32 %v491, %v555
  %v588 = vadd.f32 %v492, %v556
  %v589 = vadd.f32 %v493, %v557
  %v590 = vlaneseq
  %v591 = vshrl.u32 %v590, 7
  %v592 = vadd.s32 %v591, 8
  %v593 = vadd.s32 %v591, 16
  %v594 = vadd.s32 %v591, 24
  %v595 = vadd.s32 %v591, 32
  %v596 = vadd.s32 %v591, 40
  %v597 = vadd.s32 %v591, 48
  %v598 = vadd.s32 %v591, 56
  %v599 = vadd.s32 %v591, 64
  %v600 = vadd.s32 %v591, 72
  %v601 = vadd.s32 %v591, 80
  %v602 = vadd.s32 %v591, 88
  %v603 = vadd.s32 %v591, 96
  %v604 = vadd.s32 %v591, 104
  %v605 = vadd.s32 %v591, 112
  %v606 = vadd.s32 %v591, 120
  %v607 = vlaneseq
  %v608 = vand.u32 %v607, 127
  %v609 = vld [vmem:[%s5] sm:$0xff]
  %v610 = vld [vmem:[%s5 + $0x8] sm:$0xff]
  %v611 = vld [vmem:[%s5 + $0x10] sm:$0xff]
  %v612 = vld [vmem:[%s5 + $0x18] sm:$0xff]
  %v613 = vld [vmem:[%s5 + $0x20] sm:$0xff]
  %v614 = vld [vmem:[%s5 + $0x28] sm:$0xff]
  %v615 = vld [vmem:[%s5 + $0x30] sm:$0xff]
  %v616 = vld [vmem:[%s5 + $0x38] sm:$0xff]
  %v617 = vld [vmem:[%s5 + $0x40] sm:$0xff]
  %v618 = vld [vmem:[%s5 + $0x48] sm:$0xff]
  %v619 = vld [vmem:[%s5 + $0x50] sm:$0xff]
  %v620 = vld [vmem:[%s5 + $0x58] sm:$0xff]
  %v621 = vld [vmem:[%s5 + $0x60] sm:$0xff]
  %v622 = vld [vmem:[%s5 + $0x68] sm:$0xff]
  %v623 = vld [vmem:[%s5 + $0x70] sm:$0xff]
  %v624 = vld [vmem:[%s5 + $0x78] sm:$0xff]
  %625 = vset.pattern.permute.xlu0 0
  %626 = vperm.xlu0 %625, %v609
  %v627 = vpop.permute.xlu0 %626
  %628 = vset.pattern.permute.xlu0 0
  %629 = vperm.xlu0 %628, %v610
  %v630 = vpop.permute.xlu0 %629
  %631 = vset.pattern.permute.xlu0 0
  %632 = vperm.xlu0 %631, %v611
  %v633 = vpop.permute.xlu0 %632
  %634 = vset.pattern.permute.xlu0 0
  %635 = vperm.xlu0 %634, %v612
  %v636 = vpop.permute.xlu0 %635
  %637 = vset.pattern.permute.xlu0 0
  %638 = vperm.xlu0 %637, %v613
  %v639 = vpop.permute.xlu0 %638
  %640 = vset.pattern.permute.xlu0 0
  %641 = vperm.xlu0 %640, %v614
  %v642 = vpop.permute.xlu0 %641
  %643 = vset.pattern.permute.xlu0 0
  %644 = vperm.xlu0 %643, %v615
  %v645 = vpop.permute.xlu0 %644
  %646 = vset.pattern.permute.xlu0 0
  %647 = vperm.xlu0 %646, %v616
  %v648 = vpop.permute.xlu0 %647
  %649 = vset.pattern.permute.xlu0 0
  %650 = vperm.xlu0 %649, %v617
  %v651 = vpop.permute.xlu0 %650
  %652 = vset.pattern.permute.xlu0 0
  %653 = vperm.xlu0 %652, %v618
  %v654 = vpop.permute.xlu0 %653
  %655 = vset.pattern.permute.xlu0 0
  %656 = vperm.xlu0 %655, %v619
  %v657 = vpop.permute.xlu0 %656
  %658 = vset.pattern.permute.xlu0 0
  %659 = vperm.xlu0 %658, %v620
  %v660 = vpop.permute.xlu0 %659
  %661 = vset.pattern.permute.xlu0 0
  %662 = vperm.xlu0 %661, %v621
  %v663 = vpop.permute.xlu0 %662
  %664 = vset.pattern.permute.xlu0 0
  %665 = vperm.xlu0 %664, %v622
  %v666 = vpop.permute.xlu0 %665
  %667 = vset.pattern.permute.xlu0 0
  %668 = vperm.xlu0 %667, %v623
  %v669 = vpop.permute.xlu0 %668
  %670 = vset.pattern.permute.xlu0 0
  %671 = vperm.xlu0 %670, %v624
  %v672 = vpop.permute.xlu0 %671
  %v673 = vld [vmem:[%s6] sm:$0x1]
  %v674 = vlaneseq
  %v675 = vshrl.u32 %v674, 7
  %v676 = vsub.s32 0, %v675
  %v677 = vrot.slane %v673, %v676
  %vm678 = vcmp.eq.s32.totalorder %v627, %v677
  %vm679 = vcmp.eq.s32.totalorder %v630, %v677
  %vm680 = vcmp.eq.s32.totalorder %v633, %v677
  %vm681 = vcmp.eq.s32.totalorder %v636, %v677
  %vm682 = vcmp.eq.s32.totalorder %v639, %v677
  %vm683 = vcmp.eq.s32.totalorder %v642, %v677
  %vm684 = vcmp.eq.s32.totalorder %v645, %v677
  %vm685 = vcmp.eq.s32.totalorder %v648, %v677
  %vm686 = vcmp.eq.s32.totalorder %v651, %v677
  %vm687 = vcmp.eq.s32.totalorder %v654, %v677
  %vm688 = vcmp.eq.s32.totalorder %v657, %v677
  %vm689 = vcmp.eq.s32.totalorder %v660, %v677
  %vm690 = vcmp.eq.s32.totalorder %v663, %v677
  %vm691 = vcmp.eq.s32.totalorder %v666, %v677
  %vm692 = vcmp.eq.s32.totalorder %v669, %v677
  %vm693 = vcmp.eq.s32.totalorder %v672, %v677
  %vm694 = vcmp.ge.s32.totalorder %v591, %v608
  %vm695 = vcmp.ge.s32.totalorder %v592, %v608
  %vm696 = vcmp.ge.s32.totalorder %v593, %v608
  %vm697 = vcmp.ge.s32.totalorder %v594, %v608
  %vm698 = vcmp.ge.s32.totalorder %v595, %v608
  %vm699 = vcmp.ge.s32.totalorder %v596, %v608
  %vm700 = vcmp.ge.s32.totalorder %v597, %v608
  %vm701 = vcmp.ge.s32.totalorder %v598, %v608
  %vm702 = vcmp.ge.s32.totalorder %v599, %v608
  %vm703 = vcmp.ge.s32.totalorder %v600, %v608
  %vm704 = vcmp.ge.s32.totalorder %v601, %v608
  %vm705 = vcmp.ge.s32.totalorder %v602, %v608
  %vm706 = vcmp.ge.s32.totalorder %v603, %v608
  %vm707 = vcmp.ge.s32.totalorder %v604, %v608
  %vm708 = vcmp.ge.s32.totalorder %v605, %v608
  %vm709 = vcmp.ge.s32.totalorder %v606, %v608
  %vm710 = vmand %vm678, %vm694
  %vm711 = vmand %vm679, %vm695
  %vm712 = vmand %vm680, %vm696
  %vm713 = vmand %vm681, %vm697
  %vm714 = vmand %vm682, %vm698
  %vm715 = vmand %vm683, %vm699
  %vm716 = vmand %vm684, %vm700
  %vm717 = vmand %vm685, %vm701
  %vm718 = vmand %vm686, %vm702
  %vm719 = vmand %vm687, %vm703
  %vm720 = vmand %vm688, %vm704
  %vm721 = vmand %vm689, %vm705
  %vm722 = vmand %vm690, %vm706
  %vm723 = vmand %vm691, %vm707
  %vm724 = vmand %vm692, %vm708
  %vm725 = vmand %vm693, %vm709
  %742 = vrot.lane.b32.xlu0 %v558, 96
  %v743 = vpop.permute.xlu0 %742
  %744 = vrot.lane.b32.xlu0 %v560, 96
  %v745 = vpop.permute.xlu0 %744
  %746 = vrot.lane.b32.xlu0 %v562, 96
  %v747 = vpop.permute.xlu0 %746
  %748 = vrot.lane.b32.xlu0 %v564, 96
  %v749 = vpop.permute.xlu0 %748
  %750 = vrot.lane.b32.xlu0 %v566, 96
  %v751 = vpop.permute.xlu0 %750
  %752 = vrot.lane.b32.xlu0 %v568, 96
  %v753 = vpop.permute.xlu0 %752
  %754 = vrot.lane.b32.xlu0 %v570, 96
  %v755 = vpop.permute.xlu0 %754
  %756 = vrot.lane.b32.xlu0 %v572, 96
  %v757 = vpop.permute.xlu0 %756
  %758 = vrot.lane.b32.xlu0 %v574, 96
  %v759 = vpop.permute.xlu0 %758
  %760 = vrot.lane.b32.xlu0 %v576, 96
  %v761 = vpop.permute.xlu0 %760
  %762 = vrot.lane.b32.xlu0 %v578, 96
  %v763 = vpop.permute.xlu0 %762
  %764 = vrot.lane.b32.xlu0 %v580, 96
  %v765 = vpop.permute.xlu0 %764
  %766 = vrot.lane.b32.xlu0 %v582, 96
  %v767 = vpop.permute.xlu0 %766
  %768 = vrot.lane.b32.xlu0 %v584, 96
  %v769 = vpop.permute.xlu0 %768
  %770 = vrot.lane.b32.xlu0 %v586, 96
  %v771 = vpop.permute.xlu0 %770
  %772 = vrot.lane.b32.xlu0 %v588, 96
  %v773 = vpop.permute.xlu0 %772
  %v790 = vpack.c.bf16 %v560, %v558
  %v791 = vpack.c.bf16 %v564, %v562
  %v792 = vpack.c.bf16 %v568, %v566
  %v793 = vpack.c.bf16 %v572, %v570
  %v794 = vpack.c.bf16 %v576, %v574
  %v795 = vpack.c.bf16 %v580, %v578
  %v796 = vpack.c.bf16 %v584, %v582
  %v797 = vpack.c.bf16 %v588, %v586
  %v798 = vpack.c.bf16 %v745, %v743
  %v799 = vpack.c.bf16 %v749, %v747
  %v800 = vpack.c.bf16 %v753, %v751
  %v801 = vpack.c.bf16 %v757, %v755
  %v802 = vpack.c.bf16 %v761, %v759
  %v803 = vpack.c.bf16 %v765, %v763
  %v804 = vpack.c.bf16 %v769, %v767
  %v805 = vpack.c.bf16 %v773, %v771
  %v806 = vpack.c.bf16 %v561, %v559
  %v807 = vpack.c.bf16 %v565, %v563
  %v808 = vpack.c.bf16 %v569, %v567
  %v809 = vpack.c.bf16 %v573, %v571
  %v810 = vpack.c.bf16 %v577, %v575
  %v811 = vpack.c.bf16 %v581, %v579
  %v812 = vpack.c.bf16 %v585, %v583
  %v813 = vpack.c.bf16 %v589, %v587
  %v814 = vpack.c.bf16 %v245, %v241
  %v815 = vpack.c.bf16 %v255, %v251
  %v816 = vpack.c.bf16 %v265, %v261
  %v817 = vpack.c.bf16 %v275, %v271
  %v818 = vpack.c.bf16 %v285, %v281
  %v819 = vpack.c.bf16 %v295, %v291
  %v820 = vpack.c.bf16 %v305, %v301
  %v821 = vpack.c.bf16 %v315, %v311
  %vm822 = vcmask 261120
  %v824 = vsel %vm822, %v790, 0
  %v827 = vsel %vm822, %v791, 0
  %v830 = vsel %vm822, %v792, 0
  %v833 = vsel %vm822, %v793, 0
  %v836 = vsel %vm822, %v794, 0
  %v839 = vsel %vm822, %v795, 0
  %v842 = vsel %vm822, %v796, 0
  %v845 = vsel %vm822, %v797, 0
  %v848 = vsel %vm822, %v798, 0
  %v851 = vsel %vm822, %v799, 0
  %v854 = vsel %vm822, %v800, 0
  %v857 = vsel %vm822, %v801, 0
  %v860 = vsel %vm822, %v802, 0
  %v863 = vsel %vm822, %v803, 0
  %v866 = vsel %vm822, %v804, 0
  %v869 = vsel %vm822, %v805, 0
  %v872 = vsel %vm822, %v806, 0
  %v875 = vsel %vm822, %v807, 0
  %v878 = vsel %vm822, %v808, 0
  %v881 = vsel %vm822, %v809, 0
  %v884 = vsel %vm822, %v810, 0
  %v887 = vsel %vm822, %v811, 0
  %v890 = vsel %vm822, %v812, 0
  %v893 = vsel %vm822, %v813, 0
  %895 = vmatprep.subr.bf16.mxu0 0
  %896 = vmatpush1.bf16.xpose.msra.mxu0 %v872
  %897 = vmatprep.subr.bf16.mxu0 0
  %898 = vmatpush1.bf16.xpose.msra.mxu0 %v875
  %899 = vmatprep.subr.bf16.mxu0 0
  %900 = vmatpush1.bf16.xpose.msra.mxu0 %v878
  %901 = vmatprep.subr.bf16.mxu0 0
  %902 = vmatpush1.bf16.xpose.msra.mxu0 %v881
  %903 = vmatprep.subr.bf16.mxu0 0
  %904 = vmatpush1.bf16.xpose.msra.mxu0 %v884
  %905 = vmatprep.subr.bf16.mxu0 0
  %906 = vmatpush1.bf16.xpose.msra.mxu0 %v887
  %907 = vmatprep.subr.bf16.mxu0 0
  %908 = vmatpush1.bf16.xpose.msra.mxu0 %v890
  %909 = vmatprep.subr.bf16.mxu0 0
  %910 = vmatpush1.bf16.xpose.msra.mxu0 %v893
  %911 = vmatprep.subr.bf16.mxu0 0
  %912 = vmatpush1.bf16.xpose.msra.mxu0 0
  %913 = vmatprep.subr.bf16.mxu0 0
  %914 = vmatpush1.bf16.xpose.msra.mxu0 0
  %915 = vmatprep.subr.bf16.mxu0 0
  %916 = vmatpush1.bf16.xpose.msra.mxu0 0
  %917 = vmatprep.subr.bf16.mxu0 0
  %918 = vmatpush1.bf16.xpose.msra.mxu0 0
  %919 = vmatprep.subr.bf16.mxu0 0
  %920 = vmatpush1.bf16.xpose.msra.mxu0 0
  %921 = vmatprep.subr.bf16.mxu0 0
  %922 = vmatpush1.bf16.xpose.msra.mxu0 0
  %923 = vmatprep.subr.bf16.mxu0 0
  %924 = vmatpush1.bf16.xpose.msra.mxu0 0
  %925 = vmatprep.subr.bf16.mxu0 0
  %926 = vmatpush1.bf16.xpose.msra.mxu0 0
  %927 = vmatprep.mubr.bf16.mxu0 0
  %928 = vmatmul.mubr.bf16.gmra.mrb[0].mxu0 %v824
  %v929 = vpop.f32.mrb[0].mxu0
  %v930 = vadd.f32 0.0, %v929
  %v931 = vpop.f32.mrb[0].mxu0
  %v932 = vpop.f32.mrb[0].mxu0
  %v933 = vadd.f32 0.0, %v932
  %v934 = vpop.f32.mrb[0].mxu0
  %935 = vmatprep.mubr.bf16.mxu0 0
  %936 = vmatmul.mubr.bf16.gmra.mrb[0].mxu0 %v827
  %v937 = vpop.f32.mrb[0].mxu0
  %v938 = vadd.f32 0.0, %v937
  %v939 = vpop.f32.mrb[0].mxu0
  %v940 = vpop.f32.mrb[0].mxu0
  %v941 = vadd.f32 0.0, %v940
  %v942 = vpop.f32.mrb[0].mxu0
  %943 = vmatprep.mubr.bf16.mxu0 0
  %944 = vmatmul.mubr.bf16.gmra.mrb[0].mxu0 %v830
  %v945 = vpop.f32.mrb[0].mxu0
  %v946 = vadd.f32 0.0, %v945
  %v947 = vpop.f32.mrb[0].mxu0
  %v948 = vpop.f32.mrb[0].mxu0
  %v949 = vadd.f32 0.0, %v948
  %v950 = vpop.f32.mrb[0].mxu0
  %951 = vmatprep.mubr.bf16.mxu0 0
  %952 = vmatmul.mubr.bf16.gmra.mrb[0].mxu0 %v833
  %v953 = vpop.f32.mrb[0].mxu0
  %v954 = vadd.f32 0.0, %v953
  %v955 = vpop.f32.mrb[0].mxu0
  %v956 = vpop.f32.mrb[0].mxu0
  %v957 = vadd.f32 0.0, %v956
  %v958 = vpop.f32.mrb[0].mxu0
  %959 = vmatprep.mubr.bf16.mxu0 0
  %960 = vmatmul.mubr.bf16.gmra.mrb[0].mxu0 %v836
  %v961 = vpop.f32.mrb[0].mxu0
  %v962 = vadd.f32 0.0, %v961
  %v963 = vpop.f32.mrb[0].mxu0
  %v964 = vpop.f32.mrb[0].mxu0
  %v965 = vadd.f32 0.0, %v964
  %v966 = vpop.f32.mrb[0].mxu0
  %967 = vmatprep.mubr.bf16.mxu0 0
  %968 = vmatmul.mubr.bf16.gmra.mrb[0].mxu0 %v839
  %v969 = vpop.f32.mrb[0].mxu0
  %v970 = vadd.f32 0.0, %v969
  %v971 = vpop.f32.mrb[0].mxu0
  %v972 = vpop.f32.mrb[0].mxu0
  %v973 = vadd.f32 0.0, %v972
  %v974 = vpop.f32.mrb[0].mxu0
  %975 = vmatprep.mubr.bf16.mxu0 0
  %976 = vmatmul.mubr.bf16.gmra.mrb[0].mxu0 %v842
  %v977 = vpop.f32.mrb[0].mxu0
  %v978 = vadd.f32 0.0, %v977
  %v979 = vpop.f32.mrb[0].mxu0
  %v980 = vpop.f32.mrb[0].mxu0
  %v981 = vadd.f32 0.0, %v980
  %v982 = vpop.f32.mrb[0].mxu0
  %983 = vmatprep.mubr.bf16.mxu0 0
  %984 = vmatmul.mubr.bf16.gmra.mrb[0].mxu0 %v845
  %v985 = vpop.f32.mrb[0].mxu0
  %v986 = vadd.f32 0.0, %v985
  %v987 = vpop.f32.mrb[0].mxu0
  %v988 = vpop.f32.mrb[0].mxu0
  %v989 = vadd.f32 0.0, %v988
  %v990 = vpop.f32.mrb[0].mxu0
  %991 = vmatprep.mubr.bf16.mxu0 0
  %992 = vmatmul.mubr.bf16.gmra.mrb[0].mxu0 %v848
  %v993 = vpop.f32.mrb[0].mxu0
  %v994 = vadd.f32 0.0, %v993
  %v995 = vpop.f32.mrb[0].mxu0
  %v996 = vpop.f32.mrb[0].mxu0
  %v997 = vadd.f32 0.0, %v996
  %v998 = vpop.f32.mrb[0].mxu0
  %999 = vmatprep.mubr.bf16.mxu0 0
  %1000 = vmatmul.mubr.bf16.gmra.mrb[0].mxu0 %v851
  %v1001 = vpop.f32.mrb[0].mxu0
  %v1002 = vadd.f32 0.0, %v1001
  %v1003 = vpop.f32.mrb[0].mxu0
  %v1004 = vpop.f32.mrb[0].mxu0
  %v1005 = vadd.f32 0.0, %v1004
  %v1006 = vpop.f32.mrb[0].mxu0
  %1007 = vmatprep.mubr.bf16.mxu0 0
  %1008 = vmatmul.mubr.bf16.gmra.mrb[0].mxu0 %v854
  %v1009 = vpop.f32.mrb[0].mxu0
  %v1010 = vadd.f32 0.0, %v1009
  %v1011 = vpop.f32.mrb[0].mxu0
  %v1012 = vpop.f32.mrb[0].mxu0
  %v1013 = vadd.f32 0.0, %v1012
  %v1014 = vpop.f32.mrb[0].mxu0
  %1015 = vmatprep.mubr.bf16.mxu0 0
  %1016 = vmatmul.mubr.bf16.gmra.mrb[0].mxu0 %v857
  %v1017 = vpop.f32.mrb[0].mxu0
  %v1018 = vadd.f32 0.0, %v1017
  %v1019 = vpop.f32.mrb[0].mxu0
  %v1020 = vpop.f32.mrb[0].mxu0
  %v1021 = vadd.f32 0.0, %v1020
  %v1022 = vpop.f32.mrb[0].mxu0
  %1023 = vmatprep.mubr.bf16.mxu0 0
  %1024 = vmatmul.mubr.bf16.gmra.mrb[0].mxu0 %v860
  %v1025 = vpop.f32.mrb[0].mxu0
  %v1026 = vadd.f32 0.0, %v1025
  %v1027 = vpop.f32.mrb[0].mxu0
  %v1028 = vpop.f32.mrb[0].mxu0
  %v1029 = vadd.f32 0.0, %v1028
  %v1030 = vpop.f32.mrb[0].mxu0
  %1031 = vmatprep.mubr.bf16.mxu0 0
  %1032 = vmatmul.mubr.bf16.gmra.mrb[0].mxu0 %v863
  %v1033 = vpop.f32.mrb[0].mxu0
  %v1034 = vadd.f32 0.0, %v1033
  %v1035 = vpop.f32.mrb[0].mxu0
  %v1036 = vpop.f32.mrb[0].mxu0
  %v1037 = vadd.f32 0.0, %v1036
  %v1038 = vpop.f32.mrb[0].mxu0
  %1039 = vmatprep.mubr.bf16.mxu0 0
  %1040 = vmatmul.mubr.bf16.gmra.mrb[0].mxu0 %v866
  %v1041 = vpop.f32.mrb[0].mxu0
  %v1042 = vadd.f32 0.0, %v1041
  %v1043 = vpop.f32.mrb[0].mxu0
  %v1044 = vpop.f32.mrb[0].mxu0
  %v1045 = vadd.f32 0.0, %v1044
  %v1046 = vpop.f32.mrb[0].mxu0
  %1047 = vmatprep.mubr.bf16.mxu0 0
  %1048 = vmatmul.mubr.bf16.gmra.mrb[0].mxu0 %v869
  %v1049 = vpop.f32.mrb[0].mxu0
  %v1050 = vadd.f32 0.0, %v1049
  %v1051 = vpop.f32.mrb[0].mxu0
  %v1052 = vpop.f32.mrb[0].mxu0
  %v1053 = vadd.f32 0.0, %v1052
  %v1054 = vpop.f32.mrb[0].mxu0
  %1055 = vdwg.mxu0
  %v1056 = vsel %vm710, %v930, -1e+30
  %v1057 = vsel %vm711, %v933, -1e+30
  %v1058 = vsel %vm712, %v938, -1e+30
  %v1059 = vsel %vm713, %v941, -1e+30
  %v1060 = vsel %vm714, %v946, -1e+30
  %v1061 = vsel %vm715, %v949, -1e+30
  %v1062 = vsel %vm716, %v954, -1e+30
  %v1063 = vsel %vm717, %v957, -1e+30
  %v1064 = vsel %vm718, %v962, -1e+30
  %v1065 = vsel %vm719, %v965, -1e+30
  %v1066 = vsel %vm720, %v970, -1e+30
  %v1067 = vsel %vm721, %v973, -1e+30
  %v1068 = vsel %vm722, %v978, -1e+30
  %v1069 = vsel %vm723, %v981, -1e+30
  %v1070 = vsel %vm724, %v986, -1e+30
  %v1071 = vsel %vm725, %v989, -1e+30
  %v1072 = vsel %vm710, %v994, -1e+30
  %v1073 = vsel %vm711, %v997, -1e+30
  %v1074 = vsel %vm712, %v1002, -1e+30
  %v1075 = vsel %vm713, %v1005, -1e+30
  %v1076 = vsel %vm714, %v1010, -1e+30
  %v1077 = vsel %vm715, %v1013, -1e+30
  %v1078 = vsel %vm716, %v1018, -1e+30
  %v1079 = vsel %vm717, %v1021, -1e+30
  %v1080 = vsel %vm718, %v1026, -1e+30
  %v1081 = vsel %vm719, %v1029, -1e+30
  %v1082 = vsel %vm720, %v1034, -1e+30
  %v1083 = vsel %vm721, %v1037, -1e+30
  %v1084 = vsel %vm722, %v1042, -1e+30
  %v1085 = vsel %vm723, %v1045, -1e+30
  %v1086 = vsel %vm724, %v1050, -1e+30
  %v1087 = vsel %vm725, %v1053, -1e+30
  %1088 = vmax.xlane.f32.xlu0 %v1056
  %v1089 = vpop.xlane.xlu0 %1088
  %1090 = vmax.xlane.f32.xlu0 %v1057
  %v1091 = vpop.xlane.xlu0 %1090
  %1092 = vmax.xlane.f32.xlu0 %v1058
  %v1093 = vpop.xlane.xlu0 %1092
  %1094 = vmax.xlane.f32.xlu0 %v1059
  %v1095 = vpop.xlane.xlu0 %1094
  %1096 = vmax.xlane.f32.xlu0 %v1060
  %v1097 = vpop.xlane.xlu0 %1096
  %1098 = vmax.xlane.f32.xlu0 %v1061
  %v1099 = vpop.xlane.xlu0 %1098
  %1100 = vmax.xlane.f32.xlu0 %v1062
  %v1101 = vpop.xlane.xlu0 %1100
  %1102 = vmax.xlane.f32.xlu0 %v1063
  %v1103 = vpop.xlane.xlu0 %1102
  %1104 = vmax.xlane.f32.xlu0 %v1064
  %v1105 = vpop.xlane.xlu0 %1104
  %1106 = vmax.xlane.f32.xlu0 %v1065
  %v1107 = vpop.xlane.xlu0 %1106
  %1108 = vmax.xlane.f32.xlu0 %v1066
  %v1109 = vpop.xlane.xlu0 %1108
  %1110 = vmax.xlane.f32.xlu0 %v1067
  %v1111 = vpop.xlane.xlu0 %1110
  %1112 = vmax.xlane.f32.xlu0 %v1068
  %v1113 = vpop.xlane.xlu0 %1112
  %1114 = vmax.xlane.f32.xlu0 %v1069
  %v1115 = vpop.xlane.xlu0 %1114
  %1116 = vmax.xlane.f32.xlu0 %v1070
  %v1117 = vpop.xlane.xlu0 %1116
  %1118 = vmax.xlane.f32.xlu0 %v1071
  %v1119 = vpop.xlane.xlu0 %1118
  %1120 = vmax.xlane.f32.xlu0 %v1072
  %v1121 = vpop.xlane.xlu0 %1120
  %1122 = vmax.xlane.f32.xlu0 %v1073
  %v1123 = vpop.xlane.xlu0 %1122
  %1124 = vmax.xlane.f32.xlu0 %v1074
  %v1125 = vpop.xlane.xlu0 %1124
  %1126 = vmax.xlane.f32.xlu0 %v1075
  %v1127 = vpop.xlane.xlu0 %1126
  %1128 = vmax.xlane.f32.xlu0 %v1076
  %v1129 = vpop.xlane.xlu0 %1128
  %1130 = vmax.xlane.f32.xlu0 %v1077
  %v1131 = vpop.xlane.xlu0 %1130
  %1132 = vmax.xlane.f32.xlu0 %v1078
  %v1133 = vpop.xlane.xlu0 %1132
  %1134 = vmax.xlane.f32.xlu0 %v1079
  %v1135 = vpop.xlane.xlu0 %1134
  %1136 = vmax.xlane.f32.xlu0 %v1080
  %v1137 = vpop.xlane.xlu0 %1136
  %1138 = vmax.xlane.f32.xlu0 %v1081
  %v1139 = vpop.xlane.xlu0 %1138
  %1140 = vmax.xlane.f32.xlu0 %v1082
  %v1141 = vpop.xlane.xlu0 %1140
  %1142 = vmax.xlane.f32.xlu0 %v1083
  %v1143 = vpop.xlane.xlu0 %1142
  %1144 = vmax.xlane.f32.xlu0 %v1084
  %v1145 = vpop.xlane.xlu0 %1144
  %1146 = vmax.xlane.f32.xlu0 %v1085
  %v1147 = vpop.xlane.xlu0 %1146
  %1148 = vmax.xlane.f32.xlu0 %v1086
  %v1149 = vpop.xlane.xlu0 %1148
  %1150 = vmax.xlane.f32.xlu0 %v1087
  %v1151 = vpop.xlane.xlu0 %1150
  %v1152 = vsub.f32 %v1056, %v1089
  %v1153 = vsub.f32 %v1057, %v1091
  %v1154 = vsub.f32 %v1058, %v1093
  %v1155 = vsub.f32 %v1059, %v1095
  %v1156 = vsub.f32 %v1060, %v1097
  %v1157 = vsub.f32 %v1061, %v1099
  %v1158 = vsub.f32 %v1062, %v1101
  %v1159 = vsub.f32 %v1063, %v1103
  %v1160 = vsub.f32 %v1064, %v1105
  %v1161 = vsub.f32 %v1065, %v1107
  %v1162 = vsub.f32 %v1066, %v1109
  %v1163 = vsub.f32 %v1067, %v1111
  %v1164 = vsub.f32 %v1068, %v1113
  %v1165 = vsub.f32 %v1069, %v1115
  %v1166 = vsub.f32 %v1070, %v1117
  %v1167 = vsub.f32 %v1071, %v1119
  %v1168 = vsub.f32 %v1072, %v1121
  %v1169 = vsub.f32 %v1073, %v1123
  %v1170 = vsub.f32 %v1074, %v1125
  %v1171 = vsub.f32 %v1075, %v1127
  %v1172 = vsub.f32 %v1076, %v1129
  %v1173 = vsub.f32 %v1077, %v1131
  %v1174 = vsub.f32 %v1078, %v1133
  %v1175 = vsub.f32 %v1079, %v1135
  %v1176 = vsub.f32 %v1080, %v1137
  %v1177 = vsub.f32 %v1081, %v1139
  %v1178 = vsub.f32 %v1082, %v1141
  %v1179 = vsub.f32 %v1083, %v1143
  %v1180 = vsub.f32 %v1084, %v1145
  %v1181 = vsub.f32 %v1085, %v1147
  %v1182 = vsub.f32 %v1086, %v1149
  %v1183 = vsub.f32 %v1087, %v1151
  %v1184 = vmul.f32 %v1152, 1.442695
  %v1185 = vpow.pop %v1184
  %v1186 = vmul.f32 %v1153, 1.442695
  %v1187 = vpow.pop %v1186
  %v1188 = vmul.f32 %v1154, 1.442695
  %v1189 = vpow.pop %v1188
  %v1190 = vmul.f32 %v1155, 1.442695
  %v1191 = vpow.pop %v1190
  %v1192 = vmul.f32 %v1156, 1.442695
  %v1193 = vpow.pop %v1192
  %v1194 = vmul.f32 %v1157, 1.442695
  %v1195 = vpow.pop %v1194
  %v1196 = vmul.f32 %v1158, 1.442695
  %v1197 = vpow.pop %v1196
  %v1198 = vmul.f32 %v1159, 1.442695
  %v1199 = vpow.pop %v1198
  %v1200 = vmul.f32 %v1160, 1.442695
  %v1201 = vpow.pop %v1200
  %v1202 = vmul.f32 %v1161, 1.442695
  %v1203 = vpow.pop %v1202
  %v1204 = vmul.f32 %v1162, 1.442695
  %v1205 = vpow.pop %v1204
  %v1206 = vmul.f32 %v1163, 1.442695
  %v1207 = vpow.pop %v1206
  %v1208 = vmul.f32 %v1164, 1.442695
  %v1209 = vpow.pop %v1208
  %v1210 = vmul.f32 %v1165, 1.442695
  %v1211 = vpow.pop %v1210
  %v1212 = vmul.f32 %v1166, 1.442695
  %v1213 = vpow.pop %v1212
  %v1214 = vmul.f32 %v1167, 1.442695
  %v1215 = vpow.pop %v1214
  %v1216 = vmul.f32 %v1168, 1.442695
  %v1217 = vpow.pop %v1216
  %v1218 = vmul.f32 %v1169, 1.442695
  %v1219 = vpow.pop %v1218
  %v1220 = vmul.f32 %v1170, 1.442695
  %v1221 = vpow.pop %v1220
  %v1222 = vmul.f32 %v1171, 1.442695
  %v1223 = vpow.pop %v1222
  %v1224 = vmul.f32 %v1172, 1.442695
  %v1225 = vpow.pop %v1224
  %v1226 = vmul.f32 %v1173, 1.442695
  %v1227 = vpow.pop %v1226
  %v1228 = vmul.f32 %v1174, 1.442695
  %v1229 = vpow.pop %v1228
  %v1230 = vmul.f32 %v1175, 1.442695
  %v1231 = vpow.pop %v1230
  %v1232 = vmul.f32 %v1176, 1.442695
  %v1233 = vpow.pop %v1232
  %v1234 = vmul.f32 %v1177, 1.442695
  %v1235 = vpow.pop %v1234
  %v1236 = vmul.f32 %v1178, 1.442695
  %v1237 = vpow.pop %v1236
  %v1238 = vmul.f32 %v1179, 1.442695
  %v1239 = vpow.pop %v1238
  %v1240 = vmul.f32 %v1180, 1.442695
  %v1241 = vpow.pop %v1240
  %v1242 = vmul.f32 %v1181, 1.442695
  %v1243 = vpow.pop %v1242
  %v1244 = vmul.f32 %v1182, 1.442695
  %v1245 = vpow.pop %v1244
  %v1246 = vmul.f32 %v1183, 1.442695
  %v1247 = vpow.pop %v1246
  %1248 = vadd.xlane.f32.xlu0 %v1185
  %v1249 = vpop.xlane.xlu0 %1248
  %1250 = vadd.xlane.f32.xlu0 %v1187
  %v1251 = vpop.xlane.xlu0 %1250
  %1252 = vadd.xlane.f32.xlu0 %v1189
  %v1253 = vpop.xlane.xlu0 %1252
  %1254 = vadd.xlane.f32.xlu0 %v1191
  %v1255 = vpop.xlane.xlu0 %1254
  %1256 = vadd.xlane.f32.xlu0 %v1193
  %v1257 = vpop.xlane.xlu0 %1256
  %1258 = vadd.xlane.f32.xlu0 %v1195
  %v1259 = vpop.xlane.xlu0 %1258
  %1260 = vadd.xlane.f32.xlu0 %v1197
  %v1261 = vpop.xlane.xlu0 %1260
  %1262 = vadd.xlane.f32.xlu0 %v1199
  %v1263 = vpop.xlane.xlu0 %1262
  %1264 = vadd.xlane.f32.xlu0 %v1201
  %v1265 = vpop.xlane.xlu0 %1264
  %1266 = vadd.xlane.f32.xlu0 %v1203
  %v1267 = vpop.xlane.xlu0 %1266
  %1268 = vadd.xlane.f32.xlu0 %v1205
  %v1269 = vpop.xlane.xlu0 %1268
  %1270 = vadd.xlane.f32.xlu0 %v1207
  %v1271 = vpop.xlane.xlu0 %1270
  %1272 = vadd.xlane.f32.xlu0 %v1209
  %v1273 = vpop.xlane.xlu0 %1272
  %1274 = vadd.xlane.f32.xlu0 %v1211
  %v1275 = vpop.xlane.xlu0 %1274
  %1276 = vadd.xlane.f32.xlu0 %v1213
  %v1277 = vpop.xlane.xlu0 %1276
  %1278 = vadd.xlane.f32.xlu0 %v1215
  %v1279 = vpop.xlane.xlu0 %1278
  %1280 = vadd.xlane.f32.xlu0 %v1217
  %v1281 = vpop.xlane.xlu0 %1280
  %1282 = vadd.xlane.f32.xlu0 %v1219
  %v1283 = vpop.xlane.xlu0 %1282
  %1284 = vadd.xlane.f32.xlu0 %v1221
  %v1285 = vpop.xlane.xlu0 %1284
  %1286 = vadd.xlane.f32.xlu0 %v1223
  %v1287 = vpop.xlane.xlu0 %1286
  %1288 = vadd.xlane.f32.xlu0 %v1225
  %v1289 = vpop.xlane.xlu0 %1288
  %1290 = vadd.xlane.f32.xlu0 %v1227
  %v1291 = vpop.xlane.xlu0 %1290
  %1292 = vadd.xlane.f32.xlu0 %v1229
  %v1293 = vpop.xlane.xlu0 %1292
  %1294 = vadd.xlane.f32.xlu0 %v1231
  %v1295 = vpop.xlane.xlu0 %1294
  %1296 = vadd.xlane.f32.xlu0 %v1233
  %v1297 = vpop.xlane.xlu0 %1296
  %1298 = vadd.xlane.f32.xlu0 %v1235
  %v1299 = vpop.xlane.xlu0 %1298
  %1300 = vadd.xlane.f32.xlu0 %v1237
  %v1301 = vpop.xlane.xlu0 %1300
  %1302 = vadd.xlane.f32.xlu0 %v1239
  %v1303 = vpop.xlane.xlu0 %1302
  %1304 = vadd.xlane.f32.xlu0 %v1241
  %v1305 = vpop.xlane.xlu0 %1304
  %1306 = vadd.xlane.f32.xlu0 %v1243
  %v1307 = vpop.xlane.xlu0 %1306
  %1308 = vadd.xlane.f32.xlu0 %v1245
  %v1309 = vpop.xlane.xlu0 %1308
  %1310 = vadd.xlane.f32.xlu0 %v1247
  %v1311 = vpop.xlane.xlu0 %1310
  %v1312 = vpack.c.bf16 %v1187, %v1185
  %v1313 = vpack.c.bf16 %v1191, %v1189
  %v1314 = vpack.c.bf16 %v1195, %v1193
  %v1315 = vpack.c.bf16 %v1199, %v1197
  %v1316 = vpack.c.bf16 %v1203, %v1201
  %v1317 = vpack.c.bf16 %v1207, %v1205
  %v1318 = vpack.c.bf16 %v1211, %v1209
  %v1319 = vpack.c.bf16 %v1215, %v1213
  %v1320 = vpack.c.bf16 %v1219, %v1217
  %v1321 = vpack.c.bf16 %v1223, %v1221
  %v1322 = vpack.c.bf16 %v1227, %v1225
  %v1323 = vpack.c.bf16 %v1231, %v1229
  %v1324 = vpack.c.bf16 %v1235, %v1233
  %v1325 = vpack.c.bf16 %v1239, %v1237
  %v1326 = vpack.c.bf16 %v1243, %v1241
  %v1327 = vpack.c.bf16 %v1247, %v1245
  %1336 = vrot.lane.b32.xlu0 %v814, 64
  %v1337 = vpop.permute.xlu0 %1336
  %1338 = vrot.lane.b32.xlu0 %v815, 64
  %v1339 = vpop.permute.xlu0 %1338
  %1340 = vrot.lane.b32.xlu0 %v816, 64
  %v1341 = vpop.permute.xlu0 %1340
  %1342 = vrot.lane.b32.xlu0 %v817, 64
  %v1343 = vpop.permute.xlu0 %1342
  %1344 = vrot.lane.b32.xlu0 %v818, 64
  %v1345 = vpop.permute.xlu0 %1344
  %1346 = vrot.lane.b32.xlu0 %v819, 64
  %v1347 = vpop.permute.xlu0 %1346
  %1348 = vrot.lane.b32.xlu0 %v820, 64
  %v1349 = vpop.permute.xlu0 %1348
  %1350 = vrot.lane.b32.xlu0 %v821, 64
  %v1351 = vpop.permute.xlu0 %1350
  %1360 = vmatprep.subr.bf16.mxu0 0
  %1361 = vmatpush1.bf16.msra.mxu0 %v1337
  %1362 = vmatprep.subr.bf16.mxu0 0
  %1363 = vmatpush1.bf16.msra.mxu0 %v1339
  %1364 = vmatprep.subr.bf16.mxu0 0
  %1365 = vmatpush1.bf16.msra.mxu0 %v1341
  %1366 = vmatprep.subr.bf16.mxu0 0
  %1367 = vmatpush1.bf16.msra.mxu0 %v1343
  %1368 = vmatprep.subr.bf16.mxu0 0
  %1369 = vmatpush1.bf16.msra.mxu0 %v1345
  %1370 = vmatprep.subr.bf16.mxu0 0
  %1371 = vmatpush1.bf16.msra.mxu0 %v1347
  %1372 = vmatprep.subr.bf16.mxu0 0
  %1373 = vmatpush1.bf16.msra.mxu0 %v1349
  %1374 = vmatprep.subr.bf16.mxu0 0
  %1375 = vmatpush1.bf16.msra.mxu0 %v1351
  %1376 = vmatprep.subr.bf16.mxu0 0
  %1377 = vmatpush1.bf16.msra.mxu0 0
  %1378 = vmatprep.subr.bf16.mxu0 0
  %1379 = vmatpush1.bf16.msra.mxu0 0
  %1380 = vmatprep.subr.bf16.mxu0 0
  %1381 = vmatpush1.bf16.msra.mxu0 0
  %1382 = vmatprep.subr.bf16.mxu0 0
  %1383 = vmatpush1.bf16.msra.mxu0 0
  %1384 = vmatprep.subr.bf16.mxu0 0
  %1385 = vmatpush1.bf16.msra.mxu0 0
  %1386 = vmatprep.subr.bf16.mxu0 0
  %1387 = vmatpush1.bf16.msra.mxu0 0
  %1388 = vmatprep.subr.bf16.mxu0 0
  %1389 = vmatpush1.bf16.msra.mxu0 0
  %1390 = vmatprep.subr.bf16.mxu0 0
  %1391 = vmatpush1.bf16.msra.mxu0 0
  %1392 = vmatprep.mubr.bf16.mxu0 0
  %1393 = vmatmul.mubr.bf16.gmra.mrb[0].mxu0 %v1312
  %v1394 = vpop.f32.mrb[0].mxu0
  %v1395 = vadd.f32 0.0, %v1394
  %v1396 = vpop.f32.mrb[0].mxu0
  %v1397 = vpop.f32.mrb[0].mxu0
  %v1398 = vadd.f32 0.0, %v1397
  %v1399 = vpop.f32.mrb[0].mxu0
  %1400 = vmatprep.mubr.bf16.mxu0 0
  %1401 = vmatmul.mubr.bf16.gmra.mrb[0].mxu0 %v1313
  %v1402 = vpop.f32.mrb[0].mxu0
  %v1403 = vadd.f32 0.0, %v1402
  %v1404 = vpop.f32.mrb[0].mxu0
  %v1405 = vpop.f32.mrb[0].mxu0
  %v1406 = vadd.f32 0.0, %v1405
  %v1407 = vpop.f32.mrb[0].mxu0
  %1408 = vmatprep.mubr.bf16.mxu0 0
  %1409 = vmatmul.mubr.bf16.gmra.mrb[0].mxu0 %v1314
  %v1410 = vpop.f32.mrb[0].mxu0
  %v1411 = vadd.f32 0.0, %v1410
  %v1412 = vpop.f32.mrb[0].mxu0
  %v1413 = vpop.f32.mrb[0].mxu0
  %v1414 = vadd.f32 0.0, %v1413
  %v1415 = vpop.f32.mrb[0].mxu0
  %1416 = vmatprep.mubr.bf16.mxu0 0
  %1417 = vmatmul.mubr.bf16.gmra.mrb[0].mxu0 %v1315
  %v1418 = vpop.f32.mrb[0].mxu0
  %v1419 = vadd.f32 0.0, %v1418
  %v1420 = vpop.f32.mrb[0].mxu0
  %v1421 = vpop.f32.mrb[0].mxu0
  %v1422 = vadd.f32 0.0, %v1421
  %v1423 = vpop.f32.mrb[0].mxu0
  %1424 = vmatprep.mubr.bf16.mxu0 0
  %1425 = vmatmul.mubr.bf16.gmra.mrb[0].mxu0 %v1316
  %v1426 = vpop.f32.mrb[0].mxu0
  %v1427 = vadd.f32 0.0, %v1426
  %v1428 = vpop.f32.mrb[0].mxu0
  %v1429 = vpop.f32.mrb[0].mxu0
  %v1430 = vadd.f32 0.0, %v1429
  %v1431 = vpop.f32.mrb[0].mxu0
  %1432 = vmatprep.mubr.bf16.mxu0 0
  %1433 = vmatmul.mubr.bf16.gmra.mrb[0].mxu0 %v1317
  %v1434 = vpop.f32.mrb[0].mxu0
  %v1435 = vadd.f32 0.0, %v1434
  %v1436 = vpop.f32.mrb[0].mxu0
  %v1437 = vpop.f32.mrb[0].mxu0
  %v1438 = vadd.f32 0.0, %v1437
  %v1439 = vpop.f32.mrb[0].mxu0
  %1440 = vmatprep.mubr.bf16.mxu0 0
  %1441 = vmatmul.mubr.bf16.gmra.mrb[0].mxu0 %v1318
  %v1442 = vpop.f32.mrb[0].mxu0
  %v1443 = vadd.f32 0.0, %v1442
  %v1444 = vpop.f32.mrb[0].mxu0
  %v1445 = vpop.f32.mrb[0].mxu0
  %v1446 = vadd.f32 0.0, %v1445
  %v1447 = vpop.f32.mrb[0].mxu0
  %1448 = vmatprep.mubr.bf16.mxu0 0
  %1449 = vmatmul.mubr.bf16.gmra.mrb[0].mxu0 %v1319
  %v1450 = vpop.f32.mrb[0].mxu0
  %v1451 = vadd.f32 0.0, %v1450
  %v1452 = vpop.f32.mrb[0].mxu0
  %v1453 = vpop.f32.mrb[0].mxu0
  %v1454 = vadd.f32 0.0, %v1453
  %v1455 = vpop.f32.mrb[0].mxu0
  %1456 = vmatprep.mubr.bf16.mxu0 0
  %1457 = vmatmul.mubr.bf16.gmra.mrb[0].mxu0 %v1320
  %v1458 = vpop.f32.mrb[0].mxu0
  %v1459 = vadd.f32 0.0, %v1458
  %v1460 = vpop.f32.mrb[0].mxu0
  %v1461 = vpop.f32.mrb[0].mxu0
  %v1462 = vadd.f32 0.0, %v1461
  %v1463 = vpop.f32.mrb[0].mxu0
  %1464 = vmatprep.mubr.bf16.mxu0 0
  %1465 = vmatmul.mubr.bf16.gmra.mrb[0].mxu0 %v1321
  %v1466 = vpop.f32.mrb[0].mxu0
  %v1467 = vadd.f32 0.0, %v1466
  %v1468 = vpop.f32.mrb[0].mxu0
  %v1469 = vpop.f32.mrb[0].mxu0
  %v1470 = vadd.f32 0.0, %v1469
  %v1471 = vpop.f32.mrb[0].mxu0
  %1472 = vmatprep.mubr.bf16.mxu0 0
  %1473 = vmatmul.mubr.bf16.gmra.mrb[0].mxu0 %v1322
  %v1474 = vpop.f32.mrb[0].mxu0
  %v1475 = vadd.f32 0.0, %v1474
  %v1476 = vpop.f32.mrb[0].mxu0
  %v1477 = vpop.f32.mrb[0].mxu0
  %v1478 = vadd.f32 0.0, %v1477
  %v1479 = vpop.f32.mrb[0].mxu0
  %1480 = vmatprep.mubr.bf16.mxu0 0
  %1481 = vmatmul.mubr.bf16.gmra.mrb[0].mxu0 %v1323
  %v1482 = vpop.f32.mrb[0].mxu0
  %v1483 = vadd.f32 0.0, %v1482
  %v1484 = vpop.f32.mrb[0].mxu0
  %v1485 = vpop.f32.mrb[0].mxu0
  %v1486 = vadd.f32 0.0, %v1485
  %v1487 = vpop.f32.mrb[0].mxu0
  %1488 = vmatprep.mubr.bf16.mxu0 0
  %1489 = vmatmul.mubr.bf16.gmra.mrb[0].mxu0 %v1324
  %v1490 = vpop.f32.mrb[0].mxu0
  %v1491 = vadd.f32 0.0, %v1490
  %v1492 = vpop.f32.mrb[0].mxu0
  %v1493 = vpop.f32.mrb[0].mxu0
  %v1494 = vadd.f32 0.0, %v1493
  %v1495 = vpop.f32.mrb[0].mxu0
  %1496 = vmatprep.mubr.bf16.mxu0 0
  %1497 = vmatmul.mubr.bf16.gmra.mrb[0].mxu0 %v1325
  %v1498 = vpop.f32.mrb[0].mxu0
  %v1499 = vadd.f32 0.0, %v1498
  %v1500 = vpop.f32.mrb[0].mxu0
  %v1501 = vpop.f32.mrb[0].mxu0
  %v1502 = vadd.f32 0.0, %v1501
  %v1503 = vpop.f32.mrb[0].mxu0
  %1504 = vmatprep.mubr.bf16.mxu0 0
  %1505 = vmatmul.mubr.bf16.gmra.mrb[0].mxu0 %v1326
  %v1506 = vpop.f32.mrb[0].mxu0
  %v1507 = vadd.f32 0.0, %v1506
  %v1508 = vpop.f32.mrb[0].mxu0
  %v1509 = vpop.f32.mrb[0].mxu0
  %v1510 = vadd.f32 0.0, %v1509
  %v1511 = vpop.f32.mrb[0].mxu0
  %1512 = vmatprep.mubr.bf16.mxu0 0
  %1513 = vmatmul.mubr.bf16.gmra.mrb[0].mxu0 %v1327
  %v1514 = vpop.f32.mrb[0].mxu0
  %v1515 = vadd.f32 0.0, %v1514
  %v1516 = vpop.f32.mrb[0].mxu0
  %v1517 = vpop.f32.mrb[0].mxu0
  %v1518 = vadd.f32 0.0, %v1517
  %v1519 = vpop.f32.mrb[0].mxu0
  %1520 = vdwg.mxu0
  %v1521 = vrcp.pop %v1249
  %v1522 = vrcp.pop %v1251
  %v1523 = vrcp.pop %v1253
  %v1524 = vrcp.pop %v1255
  %v1525 = vrcp.pop %v1257
  %v1526 = vrcp.pop %v1259
  %v1527 = vrcp.pop %v1261
  %v1528 = vrcp.pop %v1263
  %v1529 = vrcp.pop %v1265
  %v1530 = vrcp.pop %v1267
  %v1531 = vrcp.pop %v1269
  %v1532 = vrcp.pop %v1271
  %v1533 = vrcp.pop %v1273
  %v1534 = vrcp.pop %v1275
  %v1535 = vrcp.pop %v1277
  %v1536 = vrcp.pop %v1279
  %v1537 = vrcp.pop %v1281
  %v1538 = vrcp.pop %v1283
  %v1539 = vrcp.pop %v1285
  %v1540 = vrcp.pop %v1287
  %v1541 = vrcp.pop %v1289
  %v1542 = vrcp.pop %v1291
  %v1543 = vrcp.pop %v1293
  %v1544 = vrcp.pop %v1295
  %v1545 = vrcp.pop %v1297
  %v1546 = vrcp.pop %v1299
  %v1547 = vrcp.pop %v1301
  %v1548 = vrcp.pop %v1303
  %v1549 = vrcp.pop %v1305
  %v1550 = vrcp.pop %v1307
  %v1551 = vrcp.pop %v1309
  %v1552 = vrcp.pop %v1311
  %v1553 = vmul.f32 %v1395, %v1521
  %v1554 = vmul.f32 %v1398, %v1522
  %v1555 = vmul.f32 %v1403, %v1523
  %v1556 = vmul.f32 %v1406, %v1524
  %v1557 = vmul.f32 %v1411, %v1525
  %v1558 = vmul.f32 %v1414, %v1526
  %v1559 = vmul.f32 %v1419, %v1527
  %v1560 = vmul.f32 %v1422, %v1528
  %v1561 = vmul.f32 %v1427, %v1529
  %v1562 = vmul.f32 %v1430, %v1530
  %v1563 = vmul.f32 %v1435, %v1531
  %v1564 = vmul.f32 %v1438, %v1532
  %v1565 = vmul.f32 %v1443, %v1533
  %v1566 = vmul.f32 %v1446, %v1534
  %v1567 = vmul.f32 %v1451, %v1535
  %v1568 = vmul.f32 %v1454, %v1536
  %v1569 = vmul.f32 %v1459, %v1537
  %v1570 = vmul.f32 %v1462, %v1538
  %v1571 = vmul.f32 %v1467, %v1539
  %v1572 = vmul.f32 %v1470, %v1540
  %v1573 = vmul.f32 %v1475, %v1541
  %v1574 = vmul.f32 %v1478, %v1542
  %v1575 = vmul.f32 %v1483, %v1543
  %v1576 = vmul.f32 %v1486, %v1544
  %v1577 = vmul.f32 %v1491, %v1545
  %v1578 = vmul.f32 %v1494, %v1546
  %v1579 = vmul.f32 %v1499, %v1547
  %v1580 = vmul.f32 %v1502, %v1548
  %v1581 = vmul.f32 %v1507, %v1549
  %v1582 = vmul.f32 %v1510, %v1550
  %v1583 = vmul.f32 %v1515, %v1551
  %v1584 = vmul.f32 %v1518, %v1552
  %v1585 = vpack.c.bf16 %v1554, %v1553
  %v1586 = vpack.c.bf16 %v1556, %v1555
  %v1587 = vpack.c.bf16 %v1558, %v1557
  %v1588 = vpack.c.bf16 %v1560, %v1559
  %v1589 = vpack.c.bf16 %v1562, %v1561
  %v1590 = vpack.c.bf16 %v1564, %v1563
  %v1591 = vpack.c.bf16 %v1566, %v1565
  %v1592 = vpack.c.bf16 %v1568, %v1567
  %1593 = vst.msk [vmem:[#allocation2] sm:$0xff] %vm822, %v1585
  %1594 = vst.msk [vmem:[#allocation2 + $0x8] sm:$0xff] %vm822, %v1586
  %1595 = vst.msk [vmem:[#allocation2 + $0x10] sm:$0xff] %vm822, %v1587
  %1596 = vst.msk [vmem:[#allocation2 + $0x18] sm:$0xff] %vm822, %v1588
  %1597 = vst.msk [vmem:[#allocation2 + $0x20] sm:$0xff] %vm822, %v1589
  %1598 = vst.msk [vmem:[#allocation2 + $0x28] sm:$0xff] %vm822, %v1590
  %1599 = vst.msk [vmem:[#allocation2 + $0x30] sm:$0xff] %vm822, %v1591
  %1600 = vst.msk [vmem:[#allocation2 + $0x38] sm:$0xff] %vm822, %v1592
  %v1601 = vpack.c.bf16 %v1570, %v1569
  %v1602 = vpack.c.bf16 %v1572, %v1571
  %v1603 = vpack.c.bf16 %v1574, %v1573
  %v1604 = vpack.c.bf16 %v1576, %v1575
  %v1605 = vpack.c.bf16 %v1578, %v1577
  %v1606 = vpack.c.bf16 %v1580, %v1579
  %v1607 = vpack.c.bf16 %v1582, %v1581
  %v1608 = vpack.c.bf16 %v1584, %v1583
  %1617 = vrot.lane.b32.xlu0 %v1601, 32
  %v1618 = vpop.permute.xlu0 %1617
  %1619 = vrot.lane.b32.xlu0 %v1602, 32
  %v1620 = vpop.permute.xlu0 %1619
  %1621 = vrot.lane.b32.xlu0 %v1603, 32
  %v1622 = vpop.permute.xlu0 %1621
  %1623 = vrot.lane.b32.xlu0 %v1604, 32
  %v1624 = vpop.permute.xlu0 %1623
  %1625 = vrot.lane.b32.xlu0 %v1605, 32
  %v1626 = vpop.permute.xlu0 %1625
  %1627 = vrot.lane.b32.xlu0 %v1606, 32
  %v1628 = vpop.permute.xlu0 %1627
  %1629 = vrot.lane.b32.xlu0 %v1607, 32
  %v1630 = vpop.permute.xlu0 %1629
  %1631 = vrot.lane.b32.xlu0 %v1608, 32
  %v1632 = vpop.permute.xlu0 %1631
  %vm1641 = vcmask 523520
  %1642 = vst.msk [vmem:[#allocation2] sm:$0xff] %vm1641, %v1618
  %1643 = vst.msk [vmem:[#allocation2 + $0x8] sm:$0xff] %vm1641, %v1620
  %1644 = vst.msk [vmem:[#allocation2 + $0x10] sm:$0xff] %vm1641, %v1622
  %1645 = vst.msk [vmem:[#allocation2 + $0x18] sm:$0xff] %vm1641, %v1624
  %1646 = vst.msk [vmem:[#allocation2 + $0x20] sm:$0xff] %vm1641, %v1626
  %1647 = vst.msk [vmem:[#allocation2 + $0x28] sm:$0xff] %vm1641, %v1628
  %1648 = vst.msk [vmem:[#allocation2 + $0x30] sm:$0xff] %vm1641, %v1630
  %1649 = vst.msk [vmem:[#allocation2 + $0x38] sm:$0xff] %vm1641, %v1632
  %1666 = vrot.lane.b32.xlu0 %v790, 64
  %v1667 = vpop.permute.xlu0 %1666
  %1668 = vrot.lane.b32.xlu0 %v791, 64
  %v1669 = vpop.permute.xlu0 %1668
  %1670 = vrot.lane.b32.xlu0 %v792, 64
  %v1671 = vpop.permute.xlu0 %1670
  %1672 = vrot.lane.b32.xlu0 %v793, 64
  %v1673 = vpop.permute.xlu0 %1672
  %1674 = vrot.lane.b32.xlu0 %v794, 64
  %v1675 = vpop.permute.xlu0 %1674
  %1676 = vrot.lane.b32.xlu0 %v795, 64
  %v1677 = vpop.permute.xlu0 %1676
  %1678 = vrot.lane.b32.xlu0 %v796, 64
  %v1679 = vpop.permute.xlu0 %1678
  %1680 = vrot.lane.b32.xlu0 %v797, 64
  %v1681 = vpop.permute.xlu0 %1680
  %1682 = vrot.lane.b32.xlu0 %v798, 64
  %v1683 = vpop.permute.xlu0 %1682
  %1684 = vrot.lane.b32.xlu0 %v799, 64
  %v1685 = vpop.permute.xlu0 %1684
  %1686 = vrot.lane.b32.xlu0 %v800, 64
  %v1687 = vpop.permute.xlu0 %1686
  %1688 = vrot.lane.b32.xlu0 %v801, 64
  %v1689 = vpop.permute.xlu0 %1688
  %1690 = vrot.lane.b32.xlu0 %v802, 64
  %v1691 = vpop.permute.xlu0 %1690
  %1692 = vrot.lane.b32.xlu0 %v803, 64
  %v1693 = vpop.permute.xlu0 %1692
  %1694 = vrot.lane.b32.xlu0 %v804, 64
  %v1695 = vpop.permute.xlu0 %1694
  %1696 = vrot.lane.b32.xlu0 %v805, 64
  %v1697 = vpop.permute.xlu0 %1696
  %1706 = vrot.lane.b32.xlu0 %v806, 96
  %v1707 = vpop.permute.xlu0 %1706
  %1708 = vrot.lane.b32.xlu0 %v807, 96
  %v1709 = vpop.permute.xlu0 %1708
  %1710 = vrot.lane.b32.xlu0 %v808, 96
  %v1711 = vpop.permute.xlu0 %1710
  %1712 = vrot.lane.b32.xlu0 %v809, 96
  %v1713 = vpop.permute.xlu0 %1712
  %1714 = vrot.lane.b32.xlu0 %v810, 96
  %v1715 = vpop.permute.xlu0 %1714
  %1716 = vrot.lane.b32.xlu0 %v811, 96
  %v1717 = vpop.permute.xlu0 %1716
  %1718 = vrot.lane.b32.xlu0 %v812, 96
  %v1719 = vpop.permute.xlu0 %1718
  %1720 = vrot.lane.b32.xlu0 %v813, 96
  %v1721 = vpop.permute.xlu0 %1720
  %v1723 = vsel %vm822, %v1667, 0
  %v1726 = vsel %vm822, %v1669, 0
  %v1729 = vsel %vm822, %v1671, 0
  %v1732 = vsel %vm822, %v1673, 0
  %v1735 = vsel %vm822, %v1675, 0
  %v1738 = vsel %vm822, %v1677, 0
  %v1741 = vsel %vm822, %v1679, 0
  %v1744 = vsel %vm822, %v1681, 0
  %v1747 = vsel %vm822, %v1683, 0
  %v1750 = vsel %vm822, %v1685, 0
  %v1753 = vsel %vm822, %v1687, 0
  %v1756 = vsel %vm822, %v1689, 0
  %v1759 = vsel %vm822, %v1691, 0
  %v1762 = vsel %vm822, %v1693, 0
  %v1765 = vsel %vm822, %v1695, 0
  %v1768 = vsel %vm822, %v1697, 0
  %v1771 = vsel %vm822, %v1707, 0
  %v1774 = vsel %vm822, %v1709, 0
  %v1777 = vsel %vm822, %v1711, 0
  %v1780 = vsel %vm822, %v1713, 0
  %v1783 = vsel %vm822, %v1715, 0
  %v1786 = vsel %vm822, %v1717, 0
  %v1789 = vsel %vm822, %v1719, 0
  %v1792 = vsel %vm822, %v1721, 0
  %1794 = vmatprep.subr.bf16.mxu0 0
  %1795 = vmatpush1.bf16.xpose.msra.mxu0 %v1771
  %1796 = vmatprep.subr.bf16.mxu0 0
  %1797 = vmatpush1.bf16.xpose.msra.mxu0 %v1774
  %1798 = vmatprep.subr.bf16.mxu0 0
  %1799 = vmatpush1.bf16.xpose.msra.mxu0 %v1777
  %1800 = vmatprep.subr.bf16.mxu0 0
  %1801 = vmatpush1.bf16.xpose.msra.mxu0 %v1780
  %1802 = vmatprep.subr.bf16.mxu0 0
  %1803 = vmatpush1.bf16.xpose.msra.mxu0 %v1783
  %1804 = vmatprep.subr.bf16.mxu0 0
  %1805 = vmatpush1.bf16.xpose.msra.mxu0 %v1786
  %1806 = vmatprep.subr.bf16.mxu0 0
  %1807 = vmatpush1.bf16.xpose.msra.mxu0 %v1789
  %1808 = vmatprep.subr.bf16.mxu0 0
  %1809 = vmatpush1.bf16.xpose.msra.mxu0 %v1792
  %1810 = vmatprep.subr.bf16.mxu0 0
  %1811 = vmatpush1.bf16.xpose.msra.mxu0 0
  %1812 = vmatprep.subr.bf16.mxu0 0
  %1813 = vmatpush1.bf16.xpose.msra.mxu0 0
  %1814 = vmatprep.subr.bf16.mxu0 0
  %1815 = vmatpush1.bf16.xpose.msra.mxu0 0
  %1816 = vmatprep.subr.bf16.mxu0 0
  %1817 = vmatpush1.bf16.xpose.msra.mxu0 0
  %1818 = vmatprep.subr.bf16.mxu0 0
  %1819 = vmatpush1.bf16.xpose.msra.mxu0 0
  %1820 = vmatprep.subr.bf16.mxu0 0
  %1821 = vmatpush1.bf16.xpose.msra.mxu0 0
  %1822 = vmatprep.subr.bf16.mxu0 0
  %1823 = vmatpush1.bf16.xpose.msra.mxu0 0
  %1824 = vmatprep.subr.bf16.mxu0 0
  %1825 = vmatpush1.bf16.xpose.msra.mxu0 0
  %1826 = vmatprep.mubr.bf16.mxu0 0
  %1827 = vmatmul.mubr.bf16.gmra.mrb[0].mxu0 %v1723
  %v1828 = vpop.f32.mrb[0].mxu0
  %v1829 = vadd.f32 0.0, %v1828
  %v1830 = vpop.f32.mrb[0].mxu0
  %v1831 = vpop.f32.mrb[0].mxu0
  %v1832 = vadd.f32 0.0, %v1831
  %v1833 = vpop.f32.mrb[0].mxu0
  %1834 = vmatprep.mubr.bf16.mxu0 0
  %1835 = vmatmul.mubr.bf16.gmra.mrb[0].mxu0 %v1726
  %v1836 = vpop.f32.mrb[0].mxu0
  %v1837 = vadd.f32 0.0, %v1836
  %v1838 = vpop.f32.mrb[0].mxu0
  %v1839 = vpop.f32.mrb[0].mxu0
  %v1840 = vadd.f32 0.0, %v1839
  %v1841 = vpop.f32.mrb[0].mxu0
  %1842 = vmatprep.mubr.bf16.mxu0 0
  %1843 = vmatmul.mubr.bf16.gmra.mrb[0].mxu0 %v1729
  %v1844 = vpop.f32.mrb[0].mxu0
  %v1845 = vadd.f32 0.0, %v1844
  %v1846 = vpop.f32.mrb[0].mxu0
  %v1847 = vpop.f32.mrb[0].mxu0
  %v1848 = vadd.f32 0.0, %v1847
  %v1849 = vpop.f32.mrb[0].mxu0
  %1850 = vmatprep.mubr.bf16.mxu0 0
  %1851 = vmatmul.mubr.bf16.gmra.mrb[0].mxu0 %v1732
  %v1852 = vpop.f32.mrb[0].mxu0
  %v1853 = vadd.f32 0.0, %v1852
  %v1854 = vpop.f32.mrb[0].mxu0
  %v1855 = vpop.f32.mrb[0].mxu0
  %v1856 = vadd.f32 0.0, %v1855
  %v1857 = vpop.f32.mrb[0].mxu0
  %1858 = vmatprep.mubr.bf16.mxu0 0
  %1859 = vmatmul.mubr.bf16.gmra.mrb[0].mxu0 %v1735
  %v1860 = vpop.f32.mrb[0].mxu0
  %v1861 = vadd.f32 0.0, %v1860
  %v1862 = vpop.f32.mrb[0].mxu0
  %v1863 = vpop.f32.mrb[0].mxu0
  %v1864 = vadd.f32 0.0, %v1863
  %v1865 = vpop.f32.mrb[0].mxu0
  %1866 = vmatprep.mubr.bf16.mxu0 0
  %1867 = vmatmul.mubr.bf16.gmra.mrb[0].mxu0 %v1738
  %v1868 = vpop.f32.mrb[0].mxu0
  %v1869 = vadd.f32 0.0, %v1868
  %v1870 = vpop.f32.mrb[0].mxu0
  %v1871 = vpop.f32.mrb[0].mxu0
  %v1872 = vadd.f32 0.0, %v1871
  %v1873 = vpop.f32.mrb[0].mxu0
  %1874 = vmatprep.mubr.bf16.mxu0 0
  %1875 = vmatmul.mubr.bf16.gmra.mrb[0].mxu0 %v1741
  %v1876 = vpop.f32.mrb[0].mxu0
  %v1877 = vadd.f32 0.0, %v1876
  %v1878 = vpop.f32.mrb[0].mxu0
  %v1879 = vpop.f32.mrb[0].mxu0
  %v1880 = vadd.f32 0.0, %v1879
  %v1881 = vpop.f32.mrb[0].mxu0
  %1882 = vmatprep.mubr.bf16.mxu0 0
  %1883 = vmatmul.mubr.bf16.gmra.mrb[0].mxu0 %v1744
  %v1884 = vpop.f32.mrb[0].mxu0
  %v1885 = vadd.f32 0.0, %v1884
  %v1886 = vpop.f32.mrb[0].mxu0
  %v1887 = vpop.f32.mrb[0].mxu0
  %v1888 = vadd.f32 0.0, %v1887
  %v1889 = vpop.f32.mrb[0].mxu0
  %1890 = vmatprep.mubr.bf16.mxu0 0
  %1891 = vmatmul.mubr.bf16.gmra.mrb[0].mxu0 %v1747
  %v1892 = vpop.f32.mrb[0].mxu0
  %v1893 = vadd.f32 0.0, %v1892
  %v1894 = vpop.f32.mrb[0].mxu0
  %v1895 = vpop.f32.mrb[0].mxu0
  %v1896 = vadd.f32 0.0, %v1895
  %v1897 = vpop.f32.mrb[0].mxu0
  %1898 = vmatprep.mubr.bf16.mxu0 0
  %1899 = vmatmul.mubr.bf16.gmra.mrb[0].mxu0 %v1750
  %v1900 = vpop.f32.mrb[0].mxu0
  %v1901 = vadd.f32 0.0, %v1900
  %v1902 = vpop.f32.mrb[0].mxu0
  %v1903 = vpop.f32.mrb[0].mxu0
  %v1904 = vadd.f32 0.0, %v1903
  %v1905 = vpop.f32.mrb[0].mxu0
  %1906 = vmatprep.mubr.bf16.mxu0 0
  %1907 = vmatmul.mubr.bf16.gmra.mrb[0].mxu0 %v1753
  %v1908 = vpop.f32.mrb[0].mxu0
  %v1909 = vadd.f32 0.0, %v1908
  %v1910 = vpop.f32.mrb[0].mxu0
  %v1911 = vpop.f32.mrb[0].mxu0
  %v1912 = vadd.f32 0.0, %v1911
  %v1913 = vpop.f32.mrb[0].mxu0
  %1914 = vmatprep.mubr.bf16.mxu0 0
  %1915 = vmatmul.mubr.bf16.gmra.mrb[0].mxu0 %v1756
  %v1916 = vpop.f32.mrb[0].mxu0
  %v1917 = vadd.f32 0.0, %v1916
  %v1918 = vpop.f32.mrb[0].mxu0
  %v1919 = vpop.f32.mrb[0].mxu0
  %v1920 = vadd.f32 0.0, %v1919
  %v1921 = vpop.f32.mrb[0].mxu0
  %1922 = vmatprep.mubr.bf16.mxu0 0
  %1923 = vmatmul.mubr.bf16.gmra.mrb[0].mxu0 %v1759
  %v1924 = vpop.f32.mrb[0].mxu0
  %v1925 = vadd.f32 0.0, %v1924
  %v1926 = vpop.f32.mrb[0].mxu0
  %v1927 = vpop.f32.mrb[0].mxu0
  %v1928 = vadd.f32 0.0, %v1927
  %v1929 = vpop.f32.mrb[0].mxu0
  %1930 = vmatprep.mubr.bf16.mxu0 0
  %1931 = vmatmul.mubr.bf16.gmra.mrb[0].mxu0 %v1762
  %v1932 = vpop.f32.mrb[0].mxu0
  %v1933 = vadd.f32 0.0, %v1932
  %v1934 = vpop.f32.mrb[0].mxu0
  %v1935 = vpop.f32.mrb[0].mxu0
  %v1936 = vadd.f32 0.0, %v1935
  %v1937 = vpop.f32.mrb[0].mxu0
  %1938 = vmatprep.mubr.bf16.mxu0 0
  %1939 = vmatmul.mubr.bf16.gmra.mrb[0].mxu0 %v1765
  %v1940 = vpop.f32.mrb[0].mxu0
  %v1941 = vadd.f32 0.0, %v1940
  %v1942 = vpop.f32.mrb[0].mxu0
  %v1943 = vpop.f32.mrb[0].mxu0
  %v1944 = vadd.f32 0.0, %v1943
  %v1945 = vpop.f32.mrb[0].mxu0
  %1946 = vmatprep.mubr.bf16.mxu0 0
  %1947 = vmatmul.mubr.bf16.gmra.mrb[0].mxu0 %v1768
  %v1948 = vpop.f32.mrb[0].mxu0
  %v1949 = vadd.f32 0.0, %v1948
  %v1950 = vpop.f32.mrb[0].mxu0
  %v1951 = vpop.f32.mrb[0].mxu0
  %v1952 = vadd.f32 0.0, %v1951
  %v1953 = vpop.f32.mrb[0].mxu0
  %1954 = vdwg.mxu0
  %v1955 = vsel %vm710, %v1829, -1e+30
  %v1956 = vsel %vm711, %v1832, -1e+30
  %v1957 = vsel %vm712, %v1837, -1e+30
  %v1958 = vsel %vm713, %v1840, -1e+30
  %v1959 = vsel %vm714, %v1845, -1e+30
  %v1960 = vsel %vm715, %v1848, -1e+30
  %v1961 = vsel %vm716, %v1853, -1e+30
  %v1962 = vsel %vm717, %v1856, -1e+30
  %v1963 = vsel %vm718, %v1861, -1e+30
  %v1964 = vsel %vm719, %v1864, -1e+30
  %v1965 = vsel %vm720, %v1869, -1e+30
  %v1966 = vsel %vm721, %v1872, -1e+30
  %v1967 = vsel %vm722, %v1877, -1e+30
  %v1968 = vsel %vm723, %v1880, -1e+30
  %v1969 = vsel %vm724, %v1885, -1e+30
  %v1970 = vsel %vm725, %v1888, -1e+30
  %v1971 = vsel %vm710, %v1893, -1e+30
  %v1972 = vsel %vm711, %v1896, -1e+30
  %v1973 = vsel %vm712, %v1901, -1e+30
  %v1974 = vsel %vm713, %v1904, -1e+30
  %v1975 = vsel %vm714, %v1909, -1e+30
  %v1976 = vsel %vm715, %v1912, -1e+30
  %v1977 = vsel %vm716, %v1917, -1e+30
  %v1978 = vsel %vm717, %v1920, -1e+30
  %v1979 = vsel %vm718, %v1925, -1e+30
  %v1980 = vsel %vm719, %v1928, -1e+30
  %v1981 = vsel %vm720, %v1933, -1e+30
  %v1982 = vsel %vm721, %v1936, -1e+30
  %v1983 = vsel %vm722, %v1941, -1e+30
  %v1984 = vsel %vm723, %v1944, -1e+30
  %v1985 = vsel %vm724, %v1949, -1e+30
  %v1986 = vsel %vm725, %v1952, -1e+30
  %1987 = vmax.xlane.f32.xlu0 %v1955
  %v1988 = vpop.xlane.xlu0 %1987
  %1989 = vmax.xlane.f32.xlu0 %v1956
  %v1990 = vpop.xlane.xlu0 %1989
  %1991 = vmax.xlane.f32.xlu0 %v1957
  %v1992 = vpop.xlane.xlu0 %1991
  %1993 = vmax.xlane.f32.xlu0 %v1958
  %v1994 = vpop.xlane.xlu0 %1993
  %1995 = vmax.xlane.f32.xlu0 %v1959
  %v1996 = vpop.xlane.xlu0 %1995
  %1997 = vmax.xlane.f32.xlu0 %v1960
  %v1998 = vpop.xlane.xlu0 %1997
  %1999 = vmax.xlane.f32.xlu0 %v1961
  %v2000 = vpop.xlane.xlu0 %1999
  %2001 = vmax.xlane.f32.xlu0 %v1962
  %v2002 = vpop.xlane.xlu0 %2001
  %2003 = vmax.xlane.f32.xlu0 %v1963
  %v2004 = vpop.xlane.xlu0 %2003
  %2005 = vmax.xlane.f32.xlu0 %v1964
  %v2006 = vpop.xlane.xlu0 %2005
  %2007 = vmax.xlane.f32.xlu0 %v1965
  %v2008 = vpop.xlane.xlu0 %2007
  %2009 = vmax.xlane.f32.xlu0 %v1966
  %v2010 = vpop.xlane.xlu0 %2009
  %2011 = vmax.xlane.f32.xlu0 %v1967
  %v2012 = vpop.xlane.xlu0 %2011
  %2013 = vmax.xlane.f32.xlu0 %v1968
  %v2014 = vpop.xlane.xlu0 %2013
  %2015 = vmax.xlane.f32.xlu0 %v1969
  %v2016 = vpop.xlane.xlu0 %2015
  %2017 = vmax.xlane.f32.xlu0 %v1970
  %v2018 = vpop.xlane.xlu0 %2017
  %2019 = vmax.xlane.f32.xlu0 %v1971
  %v2020 = vpop.xlane.xlu0 %2019
  %2021 = vmax.xlane.f32.xlu0 %v1972
  %v2022 = vpop.xlane.xlu0 %2021
  %2023 = vmax.xlane.f32.xlu0 %v1973
  %v2024 = vpop.xlane.xlu0 %2023
  %2025 = vmax.xlane.f32.xlu0 %v1974
  %v2026 = vpop.xlane.xlu0 %2025
  %2027 = vmax.xlane.f32.xlu0 %v1975
  %v2028 = vpop.xlane.xlu0 %2027
  %2029 = vmax.xlane.f32.xlu0 %v1976
  %v2030 = vpop.xlane.xlu0 %2029
  %2031 = vmax.xlane.f32.xlu0 %v1977
  %v2032 = vpop.xlane.xlu0 %2031
  %2033 = vmax.xlane.f32.xlu0 %v1978
  %v2034 = vpop.xlane.xlu0 %2033
  %2035 = vmax.xlane.f32.xlu0 %v1979
  %v2036 = vpop.xlane.xlu0 %2035
  %2037 = vmax.xlane.f32.xlu0 %v1980
  %v2038 = vpop.xlane.xlu0 %2037
  %2039 = vmax.xlane.f32.xlu0 %v1981
  %v2040 = vpop.xlane.xlu0 %2039
  %2041 = vmax.xlane.f32.xlu0 %v1982
  %v2042 = vpop.xlane.xlu0 %2041
  %2043 = vmax.xlane.f32.xlu0 %v1983
  %v2044 = vpop.xlane.xlu0 %2043
  %2045 = vmax.xlane.f32.xlu0 %v1984
  %v2046 = vpop.xlane.xlu0 %2045
  %2047 = vmax.xlane.f32.xlu0 %v1985
  %v2048 = vpop.xlane.xlu0 %2047
  %2049 = vmax.xlane.f32.xlu0 %v1986
  %v2050 = vpop.xlane.xlu0 %2049
  %v2051 = vsub.f32 %v1955, %v1988
  %v2052 = vsub.f32 %v1956, %v1990
  %v2053 = vsub.f32 %v1957, %v1992
  %v2054 = vsub.f32 %v1958, %v1994
  %v2055 = vsub.f32 %v1959, %v1996
  %v2056 = vsub.f32 %v1960, %v1998
  %v2057 = vsub.f32 %v1961, %v2000
  %v2058 = vsub.f32 %v1962, %v2002
  %v2059 = vsub.f32 %v1963, %v2004
  %v2060 = vsub.f32 %v1964, %v2006
  %v2061 = vsub.f32 %v1965, %v2008
  %v2062 = vsub.f32 %v1966, %v2010
  %v2063 = vsub.f32 %v1967, %v2012
  %v2064 = vsub.f32 %v1968, %v2014
  %v2065 = vsub.f32 %v1969, %v2016
  %v2066 = vsub.f32 %v1970, %v2018
  %v2067 = vsub.f32 %v1971, %v2020
  %v2068 = vsub.f32 %v1972, %v2022
  %v2069 = vsub.f32 %v1973, %v2024
  %v2070 = vsub.f32 %v1974, %v2026
  %v2071 = vsub.f32 %v1975, %v2028
  %v2072 = vsub.f32 %v1976, %v2030
  %v2073 = vsub.f32 %v1977, %v2032
  %v2074 = vsub.f32 %v1978, %v2034
  %v2075 = vsub.f32 %v1979, %v2036
  %v2076 = vsub.f32 %v1980, %v2038
  %v2077 = vsub.f32 %v1981, %v2040
  %v2078 = vsub.f32 %v1982, %v2042
  %v2079 = vsub.f32 %v1983, %v2044
  %v2080 = vsub.f32 %v1984, %v2046
  %v2081 = vsub.f32 %v1985, %v2048
  %v2082 = vsub.f32 %v1986, %v2050
  %v2083 = vmul.f32 %v2051, 1.442695
  %v2084 = vpow.pop %v2083
  %v2085 = vmul.f32 %v2052, 1.442695
  %v2086 = vpow.pop %v2085
  %v2087 = vmul.f32 %v2053, 1.442695
  %v2088 = vpow.pop %v2087
  %v2089 = vmul.f32 %v2054, 1.442695
  %v2090 = vpow.pop %v2089
  %v2091 = vmul.f32 %v2055, 1.442695
  %v2092 = vpow.pop %v2091
  %v2093 = vmul.f32 %v2056, 1.442695
  %v2094 = vpow.pop %v2093
  %v2095 = vmul.f32 %v2057, 1.442695
  %v2096 = vpow.pop %v2095
  %v2097 = vmul.f32 %v2058, 1.442695
  %v2098 = vpow.pop %v2097
  %v2099 = vmul.f32 %v2059, 1.442695
  %v2100 = vpow.pop %v2099
  %v2101 = vmul.f32 %v2060, 1.442695
  %v2102 = vpow.pop %v2101
  %v2103 = vmul.f32 %v2061, 1.442695
  %v2104 = vpow.pop %v2103
  %v2105 = vmul.f32 %v2062, 1.442695
  %v2106 = vpow.pop %v2105
  %v2107 = vmul.f32 %v2063, 1.442695
  %v2108 = vpow.pop %v2107
  %v2109 = vmul.f32 %v2064, 1.442695
  %v2110 = vpow.pop %v2109
  %v2111 = vmul.f32 %v2065, 1.442695
  %v2112 = vpow.pop %v2111
  %v2113 = vmul.f32 %v2066, 1.442695
  %v2114 = vpow.pop %v2113
  %v2115 = vmul.f32 %v2067, 1.442695
  %v2116 = vpow.pop %v2115
  %v2117 = vmul.f32 %v2068, 1.442695
  %v2118 = vpow.pop %v2117
  %v2119 = vmul.f32 %v2069, 1.442695
  %v2120 = vpow.pop %v2119
  %v2121 = vmul.f32 %v2070, 1.442695
  %v2122 = vpow.pop %v2121
  %v2123 = vmul.f32 %v2071, 1.442695
  %v2124 = vpow.pop %v2123
  %v2125 = vmul.f32 %v2072, 1.442695
  %v2126 = vpow.pop %v2125
  %v2127 = vmul.f32 %v2073, 1.442695
  %v2128 = vpow.pop %v2127
  %v2129 = vmul.f32 %v2074, 1.442695
  %v2130 = vpow.pop %v2129
  %v2131 = vmul.f32 %v2075, 1.442695
  %v2132 = vpow.pop %v2131
  %v2133 = vmul.f32 %v2076, 1.442695
  %v2134 = vpow.pop %v2133
  %v2135 = vmul.f32 %v2077, 1.442695
  %v2136 = vpow.pop %v2135
  %v2137 = vmul.f32 %v2078, 1.442695
  %v2138 = vpow.pop %v2137
  %v2139 = vmul.f32 %v2079, 1.442695
  %v2140 = vpow.pop %v2139
  %v2141 = vmul.f32 %v2080, 1.442695
  %v2142 = vpow.pop %v2141
  %v2143 = vmul.f32 %v2081, 1.442695
  %v2144 = vpow.pop %v2143
  %v2145 = vmul.f32 %v2082, 1.442695
  %v2146 = vpow.pop %v2145
  %2147 = vadd.xlane.f32.xlu0 %v2084
  %v2148 = vpop.xlane.xlu0 %2147
  %2149 = vadd.xlane.f32.xlu0 %v2086
  %v2150 = vpop.xlane.xlu0 %2149
  %2151 = vadd.xlane.f32.xlu0 %v2088
  %v2152 = vpop.xlane.xlu0 %2151
  %2153 = vadd.xlane.f32.xlu0 %v2090
  %v2154 = vpop.xlane.xlu0 %2153
  %2155 = vadd.xlane.f32.xlu0 %v2092
  %v2156 = vpop.xlane.xlu0 %2155
  %2157 = vadd.xlane.f32.xlu0 %v2094
  %v2158 = vpop.xlane.xlu0 %2157
  %2159 = vadd.xlane.f32.xlu0 %v2096
  %v2160 = vpop.xlane.xlu0 %2159
  %2161 = vadd.xlane.f32.xlu0 %v2098
  %v2162 = vpop.xlane.xlu0 %2161
  %2163 = vadd.xlane.f32.xlu0 %v2100
  %v2164 = vpop.xlane.xlu0 %2163
  %2165 = vadd.xlane.f32.xlu0 %v2102
  %v2166 = vpop.xlane.xlu0 %2165
  %2167 = vadd.xlane.f32.xlu0 %v2104
  %v2168 = vpop.xlane.xlu0 %2167
  %2169 = vadd.xlane.f32.xlu0 %v2106
  %v2170 = vpop.xlane.xlu0 %2169
  %2171 = vadd.xlane.f32.xlu0 %v2108
  %v2172 = vpop.xlane.xlu0 %2171
  %2173 = vadd.xlane.f32.xlu0 %v2110
  %v2174 = vpop.xlane.xlu0 %2173
  %2175 = vadd.xlane.f32.xlu0 %v2112
  %v2176 = vpop.xlane.xlu0 %2175
  %2177 = vadd.xlane.f32.xlu0 %v2114
  %v2178 = vpop.xlane.xlu0 %2177
  %2179 = vadd.xlane.f32.xlu0 %v2116
  %v2180 = vpop.xlane.xlu0 %2179
  %2181 = vadd.xlane.f32.xlu0 %v2118
  %v2182 = vpop.xlane.xlu0 %2181
  %2183 = vadd.xlane.f32.xlu0 %v2120
  %v2184 = vpop.xlane.xlu0 %2183
  %2185 = vadd.xlane.f32.xlu0 %v2122
  %v2186 = vpop.xlane.xlu0 %2185
  %2187 = vadd.xlane.f32.xlu0 %v2124
  %v2188 = vpop.xlane.xlu0 %2187
  %2189 = vadd.xlane.f32.xlu0 %v2126
  %v2190 = vpop.xlane.xlu0 %2189
  %2191 = vadd.xlane.f32.xlu0 %v2128
  %v2192 = vpop.xlane.xlu0 %2191
  %2193 = vadd.xlane.f32.xlu0 %v2130
  %v2194 = vpop.xlane.xlu0 %2193
  %2195 = vadd.xlane.f32.xlu0 %v2132
  %v2196 = vpop.xlane.xlu0 %2195
  %2197 = vadd.xlane.f32.xlu0 %v2134
  %v2198 = vpop.xlane.xlu0 %2197
  %2199 = vadd.xlane.f32.xlu0 %v2136
  %v2200 = vpop.xlane.xlu0 %2199
  %2201 = vadd.xlane.f32.xlu0 %v2138
  %v2202 = vpop.xlane.xlu0 %2201
  %2203 = vadd.xlane.f32.xlu0 %v2140
  %v2204 = vpop.xlane.xlu0 %2203
  %2205 = vadd.xlane.f32.xlu0 %v2142
  %v2206 = vpop.xlane.xlu0 %2205
  %2207 = vadd.xlane.f32.xlu0 %v2144
  %v2208 = vpop.xlane.xlu0 %2207
  %2209 = vadd.xlane.f32.xlu0 %v2146
  %v2210 = vpop.xlane.xlu0 %2209
  %v2211 = vpack.c.bf16 %v2086, %v2084
  %v2212 = vpack.c.bf16 %v2090, %v2088
  %v2213 = vpack.c.bf16 %v2094, %v2092
  %v2214 = vpack.c.bf16 %v2098, %v2096
  %v2215 = vpack.c.bf16 %v2102, %v2100
  %v2216 = vpack.c.bf16 %v2106, %v2104
  %v2217 = vpack.c.bf16 %v2110, %v2108
  %v2218 = vpack.c.bf16 %v2114, %v2112
  %v2219 = vpack.c.bf16 %v2118, %v2116
  %v2220 = vpack.c.bf16 %v2122, %v2120
  %v2221 = vpack.c.bf16 %v2126, %v2124
  %v2222 = vpack.c.bf16 %v2130, %v2128
  %v2223 = vpack.c.bf16 %v2134, %v2132
  %v2224 = vpack.c.bf16 %v2138, %v2136
  %v2225 = vpack.c.bf16 %v2142, %v2140
  %v2226 = vpack.c.bf16 %v2146, %v2144
  %2227 = vrot.lane.b32.xlu0 %v814, 32
  %v2228 = vpop.permute.xlu0 %2227
  %2229 = vrot.lane.b32.xlu0 %v815, 32
  %v2230 = vpop.permute.xlu0 %2229
  %2231 = vrot.lane.b32.xlu0 %v816, 32
  %v2232 = vpop.permute.xlu0 %2231
  %2233 = vrot.lane.b32.xlu0 %v817, 32
  %v2234 = vpop.permute.xlu0 %2233
  %2235 = vrot.lane.b32.xlu0 %v818, 32
  %v2236 = vpop.permute.xlu0 %2235
  %2237 = vrot.lane.b32.xlu0 %v819, 32
  %v2238 = vpop.permute.xlu0 %2237
  %2239 = vrot.lane.b32.xlu0 %v820, 32
  %v2240 = vpop.permute.xlu0 %2239
  %2241 = vrot.lane.b32.xlu0 %v821, 32
  %v2242 = vpop.permute.xlu0 %2241
  %2251 = vmatprep.subr.bf16.mxu0 0
  %2252 = vmatpush1.bf16.msra.mxu0 %v2228
  %2253 = vmatprep.subr.bf16.mxu0 0
  %2254 = vmatpush1.bf16.msra.mxu0 %v2230
  %2255 = vmatprep.subr.bf16.mxu0 0
  %2256 = vmatpush1.bf16.msra.mxu0 %v2232
  %2257 = vmatprep.subr.bf16.mxu0 0
  %2258 = vmatpush1.bf16.msra.mxu0 %v2234
  %2259 = vmatprep.subr.bf16.mxu0 0
  %2260 = vmatpush1.bf16.msra.mxu0 %v2236
  %2261 = vmatprep.subr.bf16.mxu0 0
  %2262 = vmatpush1.bf16.msra.mxu0 %v2238
  %2263 = vmatprep.subr.bf16.mxu0 0
  %2264 = vmatpush1.bf16.msra.mxu0 %v2240
  %2265 = vmatprep.subr.bf16.mxu0 0
  %2266 = vmatpush1.bf16.msra.mxu0 %v2242
  %2267 = vmatprep.subr.bf16.mxu0 0
  %2268 = vmatpush1.bf16.msra.mxu0 0
  %2269 = vmatprep.subr.bf16.mxu0 0
  %2270 = vmatpush1.bf16.msra.mxu0 0
  %2271 = vmatprep.subr.bf16.mxu0 0
  %2272 = vmatpush1.bf16.msra.mxu0 0
  %2273 = vmatprep.subr.bf16.mxu0 0
  %2274 = vmatpush1.bf16.msra.mxu0 0
  %2275 = vmatprep.subr.bf16.mxu0 0
  %2276 = vmatpush1.bf16.msra.mxu0 0
  %2277 = vmatprep.subr.bf16.mxu0 0
  %2278 = vmatpush1.bf16.msra.mxu0 0
  %2279 = vmatprep.subr.bf16.mxu0 0
  %2280 = vmatpush1.bf16.msra.mxu0 0
  %2281 = vmatprep.subr.bf16.mxu0 0
  %2282 = vmatpush1.bf16.msra.mxu0 0
  %2283 = vmatprep.mubr.bf16.mxu0 0
  %2284 = vmatmul.mubr.bf16.gmra.mrb[0].mxu0 %v2211
  %v2285 = vpop.f32.mrb[0].mxu0
  %v2286 = vadd.f32 0.0, %v2285
  %v2287 = vpop.f32.mrb[0].mxu0
  %v2288 = vpop.f32.mrb[0].mxu0
  %v2289 = vadd.f32 0.0, %v2288
  %v2290 = vpop.f32.mrb[0].mxu0
  %2291 = vmatprep.mubr.bf16.mxu0 0
  %2292 = vmatmul.mubr.bf16.gmra.mrb[0].mxu0 %v2212
  %v2293 = vpop.f32.mrb[0].mxu0
  %v2294 = vadd.f32 0.0, %v2293
  %v2295 = vpop.f32.mrb[0].mxu0
  %v2296 = vpop.f32.mrb[0].mxu0
  %v2297 = vadd.f32 0.0, %v2296
  %v2298 = vpop.f32.mrb[0].mxu0
  %2299 = vmatprep.mubr.bf16.mxu0 0
  %2300 = vmatmul.mubr.bf16.gmra.mrb[0].mxu0 %v2213
  %v2301 = vpop.f32.mrb[0].mxu0
  %v2302 = vadd.f32 0.0, %v2301
  %v2303 = vpop.f32.mrb[0].mxu0
  %v2304 = vpop.f32.mrb[0].mxu0
  %v2305 = vadd.f32 0.0, %v2304
  %v2306 = vpop.f32.mrb[0].mxu0
  %2307 = vmatprep.mubr.bf16.mxu0 0
  %2308 = vmatmul.mubr.bf16.gmra.mrb[0].mxu0 %v2214
  %v2309 = vpop.f32.mrb[0].mxu0
  %v2310 = vadd.f32 0.0, %v2309
  %v2311 = vpop.f32.mrb[0].mxu0
  %v2312 = vpop.f32.mrb[0].mxu0
  %v2313 = vadd.f32 0.0, %v2312
  %v2314 = vpop.f32.mrb[0].mxu0
  %2315 = vmatprep.mubr.bf16.mxu0 0
  %2316 = vmatmul.mubr.bf16.gmra.mrb[0].mxu0 %v2215
  %v2317 = vpop.f32.mrb[0].mxu0
  %v2318 = vadd.f32 0.0, %v2317
  %v2319 = vpop.f32.mrb[0].mxu0
  %v2320 = vpop.f32.mrb[0].mxu0
  %v2321 = vadd.f32 0.0, %v2320
  %v2322 = vpop.f32.mrb[0].mxu0
  %2323 = vmatprep.mubr.bf16.mxu0 0
  %2324 = vmatmul.mubr.bf16.gmra.mrb[0].mxu0 %v2216
  %v2325 = vpop.f32.mrb[0].mxu0
  %v2326 = vadd.f32 0.0, %v2325
  %v2327 = vpop.f32.mrb[0].mxu0
  %v2328 = vpop.f32.mrb[0].mxu0
  %v2329 = vadd.f32 0.0, %v2328
  %v2330 = vpop.f32.mrb[0].mxu0
  %2331 = vmatprep.mubr.bf16.mxu0 0
  %2332 = vmatmul.mubr.bf16.gmra.mrb[0].mxu0 %v2217
  %v2333 = vpop.f32.mrb[0].mxu0
  %v2334 = vadd.f32 0.0, %v2333
  %v2335 = vpop.f32.mrb[0].mxu0
  %v2336 = vpop.f32.mrb[0].mxu0
  %v2337 = vadd.f32 0.0, %v2336
  %v2338 = vpop.f32.mrb[0].mxu0
  %2339 = vmatprep.mubr.bf16.mxu0 0
  %2340 = vmatmul.mubr.bf16.gmra.mrb[0].mxu0 %v2218
  %v2341 = vpop.f32.mrb[0].mxu0
  %v2342 = vadd.f32 0.0, %v2341
  %v2343 = vpop.f32.mrb[0].mxu0
  %v2344 = vpop.f32.mrb[0].mxu0
  %v2345 = vadd.f32 0.0, %v2344
  %v2346 = vpop.f32.mrb[0].mxu0
  %2347 = vmatprep.mubr.bf16.mxu0 0
  %2348 = vmatmul.mubr.bf16.gmra.mrb[0].mxu0 %v2219
  %v2349 = vpop.f32.mrb[0].mxu0
  %v2350 = vadd.f32 0.0, %v2349
  %v2351 = vpop.f32.mrb[0].mxu0
  %v2352 = vpop.f32.mrb[0].mxu0
  %v2353 = vadd.f32 0.0, %v2352
  %v2354 = vpop.f32.mrb[0].mxu0
  %2355 = vmatprep.mubr.bf16.mxu0 0
  %2356 = vmatmul.mubr.bf16.gmra.mrb[0].mxu0 %v2220
  %v2357 = vpop.f32.mrb[0].mxu0
  %v2358 = vadd.f32 0.0, %v2357
  %v2359 = vpop.f32.mrb[0].mxu0
  %v2360 = vpop.f32.mrb[0].mxu0
  %v2361 = vadd.f32 0.0, %v2360
  %v2362 = vpop.f32.mrb[0].mxu0
  %2363 = vmatprep.mubr.bf16.mxu0 0
  %2364 = vmatmul.mubr.bf16.gmra.mrb[0].mxu0 %v2221
  %v2365 = vpop.f32.mrb[0].mxu0
  %v2366 = vadd.f32 0.0, %v2365
  %v2367 = vpop.f32.mrb[0].mxu0
  %v2368 = vpop.f32.mrb[0].mxu0
  %v2369 = vadd.f32 0.0, %v2368
  %v2370 = vpop.f32.mrb[0].mxu0
  %2371 = vmatprep.mubr.bf16.mxu0 0
  %2372 = vmatmul.mubr.bf16.gmra.mrb[0].mxu0 %v2222
  %v2373 = vpop.f32.mrb[0].mxu0
  %v2374 = vadd.f32 0.0, %v2373
  %v2375 = vpop.f32.mrb[0].mxu0
  %v2376 = vpop.f32.mrb[0].mxu0
  %v2377 = vadd.f32 0.0, %v2376
  %v2378 = vpop.f32.mrb[0].mxu0
  %2379 = vmatprep.mubr.bf16.mxu0 0
  %2380 = vmatmul.mubr.bf16.gmra.mrb[0].mxu0 %v2223
  %v2381 = vpop.f32.mrb[0].mxu0
  %v2382 = vadd.f32 0.0, %v2381
  %v2383 = vpop.f32.mrb[0].mxu0
  %v2384 = vpop.f32.mrb[0].mxu0
  %v2385 = vadd.f32 0.0, %v2384
  %v2386 = vpop.f32.mrb[0].mxu0
  %2387 = vmatprep.mubr.bf16.mxu0 0
  %2388 = vmatmul.mubr.bf16.gmra.mrb[0].mxu0 %v2224
  %v2389 = vpop.f32.mrb[0].mxu0
  %v2390 = vadd.f32 0.0, %v2389
  %v2391 = vpop.f32.mrb[0].mxu0
  %v2392 = vpop.f32.mrb[0].mxu0
  %v2393 = vadd.f32 0.0, %v2392
  %v2394 = vpop.f32.mrb[0].mxu0
  %2395 = vmatprep.mubr.bf16.mxu0 0
  %2396 = vmatmul.mubr.bf16.gmra.mrb[0].mxu0 %v2225
  %v2397 = vpop.f32.mrb[0].mxu0
  %v2398 = vadd.f32 0.0, %v2397
  %v2399 = vpop.f32.mrb[0].mxu0
  %v2400 = vpop.f32.mrb[0].mxu0
  %v2401 = vadd.f32 0.0, %v2400
  %v2402 = vpop.f32.mrb[0].mxu0
  %2403 = vmatprep.mubr.bf16.mxu0 0
  %2404 = vmatmul.mubr.bf16.gmra.mrb[0].mxu0 %v2226
  %v2405 = vpop.f32.mrb[0].mxu0
  %v2406 = vadd.f32 0.0, %v2405
  %v2407 = vpop.f32.mrb[0].mxu0
  %v2408 = vpop.f32.mrb[0].mxu0
  %v2409 = vadd.f32 0.0, %v2408
  %v2410 = vpop.f32.mrb[0].mxu0
  %2411 = vdwg.mxu0
  %v2412 = vrcp.pop %v2148
  %v2413 = vrcp.pop %v2150
  %v2414 = vrcp.pop %v2152
  %v2415 = vrcp.pop %v2154
  %v2416 = vrcp.pop %v2156
  %v2417 = vrcp.pop %v2158
  %v2418 = vrcp.pop %v2160
  %v2419 = vrcp.pop %v2162
  %v2420 = vrcp.pop %v2164
  %v2421 = vrcp.pop %v2166
  %v2422 = vrcp.pop %v2168
  %v2423 = vrcp.pop %v2170
  %v2424 = vrcp.pop %v2172
  %v2425 = vrcp.pop %v2174
  %v2426 = vrcp.pop %v2176
  %v2427 = vrcp.pop %v2178
  %v2428 = vrcp.pop %v2180
  %v2429 = vrcp.pop %v2182
  %v2430 = vrcp.pop %v2184
  %v2431 = vrcp.pop %v2186
  %v2432 = vrcp.pop %v2188
  %v2433 = vrcp.pop %v2190
  %v2434 = vrcp.pop %v2192
  %v2435 = vrcp.pop %v2194
  %v2436 = vrcp.pop %v2196
  %v2437 = vrcp.pop %v2198
  %v2438 = vrcp.pop %v2200
  %v2439 = vrcp.pop %v2202
  %v2440 = vrcp.pop %v2204
  %v2441 = vrcp.pop %v2206
  %v2442 = vrcp.pop %v2208
  %v2443 = vrcp.pop %v2210
  %v2444 = vmul.f32 %v2286, %v2412
  %v2445 = vmul.f32 %v2289, %v2413
  %v2446 = vmul.f32 %v2294, %v2414
  %v2447 = vmul.f32 %v2297, %v2415
  %v2448 = vmul.f32 %v2302, %v2416
  %v2449 = vmul.f32 %v2305, %v2417
  %v2450 = vmul.f32 %v2310, %v2418
  %v2451 = vmul.f32 %v2313, %v2419
  %v2452 = vmul.f32 %v2318, %v2420
  %v2453 = vmul.f32 %v2321, %v2421
  %v2454 = vmul.f32 %v2326, %v2422
  %v2455 = vmul.f32 %v2329, %v2423
  %v2456 = vmul.f32 %v2334, %v2424
  %v2457 = vmul.f32 %v2337, %v2425
  %v2458 = vmul.f32 %v2342, %v2426
  %v2459 = vmul.f32 %v2345, %v2427
  %v2460 = vmul.f32 %v2350, %v2428
  %v2461 = vmul.f32 %v2353, %v2429
  %v2462 = vmul.f32 %v2358, %v2430
  %v2463 = vmul.f32 %v2361, %v2431
  %v2464 = vmul.f32 %v2366, %v2432
  %v2465 = vmul.f32 %v2369, %v2433
  %v2466 = vmul.f32 %v2374, %v2434
  %v2467 = vmul.f32 %v2377, %v2435
  %v2468 = vmul.f32 %v2382, %v2436
  %v2469 = vmul.f32 %v2385, %v2437
  %v2470 = vmul.f32 %v2390, %v2438
  %v2471 = vmul.f32 %v2393, %v2439
  %v2472 = vmul.f32 %v2398, %v2440
  %v2473 = vmul.f32 %v2401, %v2441
  %v2474 = vmul.f32 %v2406, %v2442
  %v2475 = vmul.f32 %v2409, %v2443
  %v2476 = vpack.c.bf16 %v2445, %v2444
  %v2477 = vpack.c.bf16 %v2447, %v2446
  %v2478 = vpack.c.bf16 %v2449, %v2448
  %v2479 = vpack.c.bf16 %v2451, %v2450
  %v2480 = vpack.c.bf16 %v2453, %v2452
  %v2481 = vpack.c.bf16 %v2455, %v2454
  %v2482 = vpack.c.bf16 %v2457, %v2456
  %v2483 = vpack.c.bf16 %v2459, %v2458
  %2492 = vrot.lane.b32.xlu0 %v2476, 64
  %v2493 = vpop.permute.xlu0 %2492
  %2494 = vrot.lane.b32.xlu0 %v2477, 64
  %v2495 = vpop.permute.xlu0 %2494
  %2496 = vrot.lane.b32.xlu0 %v2478, 64
  %v2497 = vpop.permute.xlu0 %2496
  %2498 = vrot.lane.b32.xlu0 %v2479, 64
  %v2499 = vpop.permute.xlu0 %2498
  %2500 = vrot.lane.b32.xlu0 %v2480, 64
  %v2501 = vpop.permute.xlu0 %2500
  %2502 = vrot.lane.b32.xlu0 %v2481, 64
  %v2503 = vpop.permute.xlu0 %2502
  %2504 = vrot.lane.b32.xlu0 %v2482, 64
  %v2505 = vpop.permute.xlu0 %2504
  %2506 = vrot.lane.b32.xlu0 %v2483, 64
  %v2507 = vpop.permute.xlu0 %2506
  %vm2516 = vcmask 785920
  %2517 = vst.msk [vmem:[#allocation2] sm:$0xff] %vm2516, %v2493
  %2518 = vst.msk [vmem:[#allocation2 + $0x8] sm:$0xff] %vm2516, %v2495
  %2519 = vst.msk [vmem:[#allocation2 + $0x10] sm:$0xff] %vm2516, %v2497
  %2520 = vst.msk [vmem:[#allocation2 + $0x18] sm:$0xff] %vm2516, %v2499
  %2521 = vst.msk [vmem:[#allocation2 + $0x20] sm:$0xff] %vm2516, %v2501
  %2522 = vst.msk [vmem:[#allocation2 + $0x28] sm:$0xff] %vm2516, %v2503
  %2523 = vst.msk [vmem:[#allocation2 + $0x30] sm:$0xff] %vm2516, %v2505
  %2524 = vst.msk [vmem:[#allocation2 + $0x38] sm:$0xff] %vm2516, %v2507
  %v2525 = vpack.c.bf16 %v2461, %v2460
  %v2526 = vpack.c.bf16 %v2463, %v2462
  %v2527 = vpack.c.bf16 %v2465, %v2464
  %v2528 = vpack.c.bf16 %v2467, %v2466
  %v2529 = vpack.c.bf16 %v2469, %v2468
  %v2530 = vpack.c.bf16 %v2471, %v2470
  %v2531 = vpack.c.bf16 %v2473, %v2472
  %v2532 = vpack.c.bf16 %v2475, %v2474
  %2541 = vrot.lane.b32.xlu0 %v2525, 96
  %v2542 = vpop.permute.xlu0 %2541
  %2543 = vrot.lane.b32.xlu0 %v2526, 96
  %v2544 = vpop.permute.xlu0 %2543
  %2545 = vrot.lane.b32.xlu0 %v2527, 96
  %v2546 = vpop.permute.xlu0 %2545
  %2547 = vrot.lane.b32.xlu0 %v2528, 96
  %v2548 = vpop.permute.xlu0 %2547
  %2549 = vrot.lane.b32.xlu0 %v2529, 96
  %v2550 = vpop.permute.xlu0 %2549
  %2551 = vrot.lane.b32.xlu0 %v2530, 96
  %v2552 = vpop.permute.xlu0 %2551
  %2553 = vrot.lane.b32.xlu0 %v2531, 96
  %v2554 = vpop.permute.xlu0 %2553
  %2555 = vrot.lane.b32.xlu0 %v2532, 96
  %v2556 = vpop.permute.xlu0 %2555
  %vm2565 = vcmask 1048320
  %2566 = vst.msk [vmem:[#allocation2] sm:$0xff] %vm2565, %v2542
  %2567 = vst.msk [vmem:[#allocation2 + $0x8] sm:$0xff] %vm2565, %v2544
  %2568 = vst.msk [vmem:[#allocation2 + $0x10] sm:$0xff] %vm2565, %v2546
  %2569 = vst.msk [vmem:[#allocation2 + $0x18] sm:$0xff] %vm2565, %v2548
  %2570 = vst.msk [vmem:[#allocation2 + $0x20] sm:$0xff] %vm2565, %v2550
  %2571 = vst.msk [vmem:[#allocation2 + $0x28] sm:$0xff] %vm2565, %v2552
  %2572 = vst.msk [vmem:[#allocation2 + $0x30] sm:$0xff] %vm2565, %v2554
  %2573 = vst.msk [vmem:[#allocation2 + $0x38] sm:$0xff] %vm2565, %v2556
  %v2574 = vld [vmem:[#allocation2] sm:$0xff]
  %v2575 = vld [vmem:[#allocation2 + $0x8] sm:$0xff]
  %v2576 = vld [vmem:[#allocation2 + $0x10] sm:$0xff]
  %v2577 = vld [vmem:[#allocation2 + $0x18] sm:$0xff]
  %v2578 = vld [vmem:[#allocation2 + $0x20] sm:$0xff]
  %v2579 = vld [vmem:[#allocation2 + $0x28] sm:$0xff]
  %v2580 = vld [vmem:[#allocation2 + $0x30] sm:$0xff]
  %v2581 = vld [vmem:[#allocation2 + $0x38] sm:$0xff]
  %v2582 = vld [vmem:[%s2] sm:$0xf]
  %v2583 = vld [vmem:[%s2 + $0x4] sm:$0xf]
  %v2584 = vld [vmem:[%s2 + $0x8] sm:$0xf]
  %v2585 = vld [vmem:[%s2 + $0xc] sm:$0xf]
  %v2586 = vld [vmem:[%s2 + $0x10] sm:$0xf]
  %v2587 = vld [vmem:[%s2 + $0x14] sm:$0xf]
  %v2588 = vld [vmem:[%s2 + $0x18] sm:$0xf]
  %v2589 = vld [vmem:[%s2 + $0x1c] sm:$0xf]
  %v2590 = vld [vmem:[%s2 + $0x20] sm:$0xf]
  %v2591 = vld [vmem:[%s2 + $0x24] sm:$0xf]
  %v2592 = vld [vmem:[%s2 + $0x28] sm:$0xf]
  %v2593 = vld [vmem:[%s2 + $0x2c] sm:$0xf]
  %v2594 = vld [vmem:[%s2 + $0x30] sm:$0xf]
  %v2595 = vld [vmem:[%s2 + $0x34] sm:$0xf]
  %v2596 = vld [vmem:[%s2 + $0x38] sm:$0xf]
  %v2597 = vld [vmem:[%s2 + $0x3c] sm:$0xf]
  %v2614 = vunpack.c.l.b16 %v2582
  %v2615 = vunpack.c.l.b16 %v2583
  %v2616 = vunpack.c.l.b16 %v2584
  %v2617 = vunpack.c.l.b16 %v2585
  %v2618 = vunpack.c.l.b16 %v2586
  %v2619 = vunpack.c.l.b16 %v2587
  %v2620 = vunpack.c.l.b16 %v2588
  %v2621 = vunpack.c.l.b16 %v2589
  %v2622 = vunpack.c.l.b16 %v2590
  %v2623 = vunpack.c.l.b16 %v2591
  %v2624 = vunpack.c.l.b16 %v2592
  %v2625 = vunpack.c.l.b16 %v2593
  %v2626 = vunpack.c.l.b16 %v2594
  %v2627 = vunpack.c.l.b16 %v2595
  %v2628 = vunpack.c.l.b16 %v2596
  %v2629 = vunpack.c.l.b16 %v2597
  %v2630 = vpack.c.b16 %v2615, %v2614
  %v2631 = vpack.c.b16 %v2617, %v2616
  %v2632 = vpack.c.b16 %v2619, %v2618
  %v2633 = vpack.c.b16 %v2621, %v2620
  %v2634 = vpack.c.b16 %v2623, %v2622
  %v2635 = vpack.c.b16 %v2625, %v2624
  %v2636 = vpack.c.b16 %v2627, %v2626
  %v2637 = vpack.c.b16 %v2629, %v2628
  %2646 = vmatprep.subr.bf16.mxu0 0
  %2647 = vmatpush1.bf16.msra.mxu0 %v2630
  %2648 = vmatprep.subr.bf16.mxu0 0
  %2649 = vmatpush1.bf16.msra.mxu0 %v2631
  %2650 = vmatprep.subr.bf16.mxu0 0
  %2651 = vmatpush1.bf16.msra.mxu0 %v2632
  %2652 = vmatprep.subr.bf16.mxu0 0
  %2653 = vmatpush1.bf16.msra.mxu0 %v2633
  %2654 = vmatprep.subr.bf16.mxu0 0
  %2655 = vmatpush1.bf16.msra.mxu0 %v2634
  %2656 = vmatprep.subr.bf16.mxu0 0
  %2657 = vmatpush1.bf16.msra.mxu0 %v2635
  %2658 = vmatprep.subr.bf16.mxu0 0
  %2659 = vmatpush1.bf16.msra.mxu0 %v2636
  %2660 = vmatprep.subr.bf16.mxu0 0
  %2661 = vmatpush1.bf16.msra.mxu0 %v2637
  %2662 = vmatprep.subr.bf16.mxu0 0
  %2663 = vmatpush1.bf16.msra.mxu0 0
  %2664 = vmatprep.subr.bf16.mxu0 0
  %2665 = vmatpush1.bf16.msra.mxu0 0
  %2666 = vmatprep.subr.bf16.mxu0 0
  %2667 = vmatpush1.bf16.msra.mxu0 0
  %2668 = vmatprep.subr.bf16.mxu0 0
  %2669 = vmatpush1.bf16.msra.mxu0 0
  %2670 = vmatprep.subr.bf16.mxu0 0
  %2671 = vmatpush1.bf16.msra.mxu0 0
  %2672 = vmatprep.subr.bf16.mxu0 0
  %2673 = vmatpush1.bf16.msra.mxu0 0
  %2674 = vmatprep.subr.bf16.mxu0 0
  %2675 = vmatpush1.bf16.msra.mxu0 0
  %2676 = vmatprep.subr.bf16.mxu0 0
  %2677 = vmatpush1.bf16.msra.mxu0 0
  %2678 = vmatprep.mubr.bf16.mxu0 0
  %2679 = vmatmul.mubr.bf16.gmra.mrb[0].mxu0 %v2574
  %v2680 = vpop.f32.mrb[0].mxu0
  %v2681 = vadd.f32 0.0, %v2680
  %v2682 = vpop.f32.mrb[0].mxu0
  %v2683 = vpop.f32.mrb[0].mxu0
  %v2684 = vadd.f32 0.0, %v2683
  %v2685 = vpop.f32.mrb[0].mxu0
  %2686 = vmatprep.mubr.bf16.mxu0 0
  %2687 = vmatmul.mubr.bf16.gmra.mrb[0].mxu0 %v2575
  %v2688 = vpop.f32.mrb[0].mxu0
  %v2689 = vadd.f32 0.0, %v2688
  %v2690 = vpop.f32.mrb[0].mxu0
  %v2691 = vpop.f32.mrb[0].mxu0
  %v2692 = vadd.f32 0.0, %v2691
  %v2693 = vpop.f32.mrb[0].mxu0
  %2694 = vmatprep.mubr.bf16.mxu0 0
  %2695 = vmatmul.mubr.bf16.gmra.mrb[0].mxu0 %v2576
  %v2696 = vpop.f32.mrb[0].mxu0
  %v2697 = vadd.f32 0.0, %v2696
  %v2698 = vpop.f32.mrb[0].mxu0
  %v2699 = vpop.f32.mrb[0].mxu0
  %v2700 = vadd.f32 0.0, %v2699
  %v2701 = vpop.f32.mrb[0].mxu0
  %2702 = vmatprep.mubr.bf16.mxu0 0
  %2703 = vmatmul.mubr.bf16.gmra.mrb[0].mxu0 %v2577
  %v2704 = vpop.f32.mrb[0].mxu0
  %v2705 = vadd.f32 0.0, %v2704
  %v2706 = vpop.f32.mrb[0].mxu0
  %v2707 = vpop.f32.mrb[0].mxu0
  %v2708 = vadd.f32 0.0, %v2707
  %v2709 = vpop.f32.mrb[0].mxu0
  %2710 = vmatprep.mubr.bf16.mxu0 0
  %2711 = vmatmul.mubr.bf16.gmra.mrb[0].mxu0 %v2578
  %v2712 = vpop.f32.mrb[0].mxu0
  %v2713 = vadd.f32 0.0, %v2712
  %v2714 = vpop.f32.mrb[0].mxu0
  %v2715 = vpop.f32.mrb[0].mxu0
  %v2716 = vadd.f32 0.0, %v2715
  %v2717 = vpop.f32.mrb[0].mxu0
  %2718 = vmatprep.mubr.bf16.mxu0 0
  %2719 = vmatmul.mubr.bf16.gmra.mrb[0].mxu0 %v2579
  %v2720 = vpop.f32.mrb[0].mxu0
  %v2721 = vadd.f32 0.0, %v2720
  %v2722 = vpop.f32.mrb[0].mxu0
  %v2723 = vpop.f32.mrb[0].mxu0
  %v2724 = vadd.f32 0.0, %v2723
  %v2725 = vpop.f32.mrb[0].mxu0
  %2726 = vmatprep.mubr.bf16.mxu0 0
  %2727 = vmatmul.mubr.bf16.gmra.mrb[0].mxu0 %v2580
  %v2728 = vpop.f32.mrb[0].mxu0
  %v2729 = vadd.f32 0.0, %v2728
  %v2730 = vpop.f32.mrb[0].mxu0
  %v2731 = vpop.f32.mrb[0].mxu0
  %v2732 = vadd.f32 0.0, %v2731
  %v2733 = vpop.f32.mrb[0].mxu0
  %2734 = vmatprep.mubr.bf16.mxu0 0
  %2735 = vmatmul.mubr.bf16.gmra.mrb[0].mxu0 %v2581
  %v2736 = vpop.f32.mrb[0].mxu0
  %v2737 = vadd.f32 0.0, %v2736
  %v2738 = vpop.f32.mrb[0].mxu0
  %v2739 = vpop.f32.mrb[0].mxu0
  %v2740 = vadd.f32 0.0, %v2739
  %v2741 = vpop.f32.mrb[0].mxu0
  %2742 = vdwg.mxu0
  %v2743 = vpack.c.bf16 %v2684, %v2681
  %v2744 = vpack.c.bf16 %v2692, %v2689
  %v2745 = vpack.c.bf16 %v2700, %v2697
  %v2746 = vpack.c.bf16 %v2708, %v2705
  %v2747 = vpack.c.bf16 %v2716, %v2713
  %v2748 = vpack.c.bf16 %v2724, %v2721
  %v2749 = vpack.c.bf16 %v2732, %v2729
  %v2750 = vpack.c.bf16 %v2740, %v2737
  %v2759 = vunpack.c.l.b16 %v2743
  %v2760 = vunpack.c.h.b16 %v2743
  %v2761 = vunpack.c.l.b16 %v2744
  %v2762 = vunpack.c.h.b16 %v2744
  %v2763 = vunpack.c.l.b16 %v2745
  %v2764 = vunpack.c.h.b16 %v2745
  %v2765 = vunpack.c.l.b16 %v2746
  %v2766 = vunpack.c.h.b16 %v2746
  %v2767 = vunpack.c.l.b16 %v2747
  %v2768 = vunpack.c.h.b16 %v2747
  %v2769 = vunpack.c.l.b16 %v2748
  %v2770 = vunpack.c.h.b16 %v2748
  %v2771 = vunpack.c.l.b16 %v2749
  %v2772 = vunpack.c.h.b16 %v2749
  %v2773 = vunpack.c.l.b16 %v2750
  %v2774 = vunpack.c.h.b16 %v2750
  %v2775 = vpack.c.b16 %v2759, %v2759
  %v2776 = vpack.c.b16 %v2760, %v2760
  %v2777 = vpack.c.b16 %v2761, %v2761
  %v2778 = vpack.c.b16 %v2762, %v2762
  %v2779 = vpack.c.b16 %v2763, %v2763
  %v2780 = vpack.c.b16 %v2764, %v2764
  %v2781 = vpack.c.b16 %v2765, %v2765
  %v2782 = vpack.c.b16 %v2766, %v2766
  %v2783 = vpack.c.b16 %v2767, %v2767
  %v2784 = vpack.c.b16 %v2768, %v2768
  %v2785 = vpack.c.b16 %v2769, %v2769
  %v2786 = vpack.c.b16 %v2770, %v2770
  %v2787 = vpack.c.b16 %v2771, %v2771
  %v2788 = vpack.c.b16 %v2772, %v2772
  %v2789 = vpack.c.b16 %v2773, %v2773
  %v2790 = vpack.c.b16 %v2774, %v2774
  %vm2807 = vcmask 519168
  %2808 = vst.msk [vmem:[%s7] sm:$0xf] %vm2807, %v2775
  %2809 = vst.msk [vmem:[%s7 + $0x4] sm:$0xf] %vm2807, %v2776
  %2810 = vst.msk [vmem:[%s7 + $0x8] sm:$0xf] %vm2807, %v2777
  %2811 = vst.msk [vmem:[%s7 + $0xc] sm:$0xf] %vm2807, %v2778
  %2812 = vst.msk [vmem:[%s7 + $0x10] sm:$0xf] %vm2807, %v2779
  %2813 = vst.msk [vmem:[%s7 + $0x14] sm:$0xf] %vm2807, %v2780
  %2814 = vst.msk [vmem:[%s7 + $0x18] sm:$0xf] %vm2807, %v2781
  %2815 = vst.msk [vmem:[%s7 + $0x1c] sm:$0xf] %vm2807, %v2782
  %2816 = vst.msk [vmem:[%s7 + $0x20] sm:$0xf] %vm2807, %v2783
  %2817 = vst.msk [vmem:[%s7 + $0x24] sm:$0xf] %vm2807, %v2784
  %2818 = vst.msk [vmem:[%s7 + $0x28] sm:$0xf] %vm2807, %v2785
  %2819 = vst.msk [vmem:[%s7 + $0x2c] sm:$0xf] %vm2807, %v2786
  %2820 = vst.msk [vmem:[%s7 + $0x30] sm:$0xf] %vm2807, %v2787
  %2821 = vst.msk [vmem:[%s7 + $0x34] sm:$0xf] %vm2807, %v2788
  %2822 = vst.msk [vmem:[%s7 + $0x38] sm:$0xf] %vm2807, %v2789
  %2823 = vst.msk [vmem:[%s7 + $0x3c] sm:$0xf] %vm2807, %v2790
  // Predicated region
  $region30: #{self_attention_forward.1} parent=0 // pred_check
    _
  $region31: #{self_attention_forward.1} parent=0 // pred_check_branch
    %2825 = sbr.rel (0) target = $region33
  $region32: #{self_attention_forward.1} parent=0 // pred_region
    _
  $region33: #{self_attention_forward.1} parent=0 // pred_fallthru
    _
  // Predicated region
  $region34: #{self_attention_forward.1} parent=0 // pred_check
    _
  $region35: #{self_attention_forward.1} parent=0 // pred_check_branch
    %2827 = sbr.rel (0) target = $region37
  $region36: #{self_attention_forward.1} parent=0 // pred_region
    _
  $region37: #{self_attention_forward.1} parent=0 // pred_fallthru
    _

</llo_original>
